<compile_context>
chip_gen: v5e
topology: v5e:2x2
jax: 0.10.0
libtpu: 0.0.40
codegen_flags: <defaults>
</compile_context>

<pallas_src>
import functools

import jax
import jax.numpy as jnp
from jax import lax
from jax.experimental import pallas as pl
from jax.experimental.pallas import tpu as pltpu


_COMPUTE_DTYPE = jnp.bfloat16


@functools.lru_cache(maxsize=None)
def _vmem_limit_bytes():
    """~75% of physical VMEM (96 MiB on v5e/v6e, 48 MiB on v7x), safe default."""
    phys = 64 * 1024 * 1024
    try:
        phys = int(pltpu.get_tpu_info().vmem_capacity_bytes)
    except Exception:
        pass
    return min(int(phys * 3 // 4), 100 * 1024 * 1024)


def _pick_tile_h(h, w, kdim, need_even):
    """Largest divisor TH of H such that the (TH*W, K) bf16 patch is MXU-sized
    (TH*W <= ~2048 rows) and VMEM-friendly (patch <= ~8 MiB)."""
    target_rows = 2048
    budget = 8 * 1024 * 1024
    divs = [d for d in range(h, 0, -1)
            if h % d == 0 and (not need_even or d % 2 == 0)]
    if not divs:
        return h
    for d in divs:                                   # descending
        if d * w <= max(target_rows, w) and d * w * kdim * 2 <= budget:
            return d
    return divs[-1]                                  # smallest valid divisor


# ----------------------------------------------------------------------------
# Conv 3x3 (padding=1) + bias + ReLU, optionally fused 2x2/s2 pool.
# grid = (N, H // TH), both axes parallel.  One MXU matmul per row tile with
# K = 9*Cin (or K = 27 for the pre-im2col'ed first layer).
# ----------------------------------------------------------------------------
def _conv_kernel(x_ref, w_ref, b_ref, *rest, tile_h, width, cin, kdim, cout,
                 taps, pool_mode, emit_relu):
    th, W = tile_h, width
    n_out = int(emit_relu) + int(pool_mode is not None)
    out_refs = rest[:n_out]
    patch_ref = rest[n_out] if taps == 9 else None
    oi = 0
    relu_ref = None
    pool_ref = None
    if emit_relu:
        relu_ref = out_refs[oi]
        oi += 1
    if pool_mode is not None:
        pool_ref = out_refs[oi]
        oi += 1

    r = pl.program_id(1)

    if taps == 9:
        # x_ref: (1, H+2, W+2, Cin) zero-padded image, fetched once per image.
        # Write the 9 tap windows of this row tile into the (TH*W, 9*Cin)
        # VMEM patch scratch; one dot with the folded-K weight afterwards.
        r0 = r * th
        for dh in range(3):
            rows = x_ref[0, pl.ds(r0 + dh, th), :, :]        # (TH, W+2, Cin)
            for dw in range(3):
                k = dh * 3 + dw
                patch_ref[:, k * cin:(k + 1) * cin] = (
                    rows[:, dw:dw + W, :].reshape(th * W, cin))
        patch = patch_ref[...]
    else:
        # x_ref: (1, TH, W, K) — taps already folded on the wrapper side.
        patch = x_ref[0].reshape(th * W, kdim)

    acc = jnp.dot(patch, w_ref[...], preferred_element_type=jnp.float32)
    acc = jnp.maximum(acc + b_ref[...], 0.0)                 # (TH*W, Cout) f32

    if emit_relu:
        relu_ref[...] = acc.reshape(1, th, W, cout).astype(relu_ref.dtype)

    if pool_mode is not None:
        y = acc
        if pool_mode == "avg":
            # Match unfused semantics: average the bf16-rounded activations.
            y = y.astype(_COMPUTE_DTYPE).astype(jnp.float32)
        yw = y.reshape(th, W // 2, 2, cout)
        if pool_mode == "avg":
            m = yw[:, :, 0, :] + yw[:, :, 1, :]
        else:
            m = jnp.maximum(yw[:, :, 0, :], yw[:, :, 1, :])
        mh = m.reshape(th // 2, 2, W // 2, cout)
        if pool_mode == "avg":
            p = (mh[:, 0] + mh[:, 1]) * 0.25
        else:
            p = jnp.maximum(mh[:, 0], mh[:, 1])
        pool_ref[...] = p.reshape(1, th // 2, W // 2, cout).astype(pool_ref.dtype)


def conv3x3_relu(x, w2d, b2, *, pool_mode=None, emit_relu=True,
                 pre_im2col=False):
    """3x3 'same' conv + bias + ReLU, optionally with a fused 2x2/s2 pool.

    x:   (N,H,W,Cin) bf16 activations, or (N,H,W,9*Cin) if pre_im2col.
    w2d: (9*Cin, Cout) bf16.   b2: (1, Cout) f32.
    Returns [relu] / [pooled] / [relu, pooled] depending on the flags.
    """
    assert emit_relu or pool_mode is not None
    N, H, W, xc = x.shape
    kdim, cout = w2d.shape
    if pre_im2col:
        assert xc == kdim
        cin = 0                                     # unused on this path
    else:
        cin = xc
        assert kdim == 9 * cin
    need_even = pool_mode is not None
    if need_even:
        assert H % 2 == 0 and W % 2 == 0, "fused pool needs even H/W"

    th = _pick_tile_h(H, W, kdim, need_even)
    nh = H // th

    out_shapes = []
    out_specs = []
    if emit_relu:
        out_shapes.append(jax.ShapeDtypeStruct((N, H, W, cout), _COMPUTE_DTYPE))
        out_specs.append(pl.BlockSpec((1, th, W, cout),
                                      lambda n, r: (n, r, 0, 0)))
    if pool_mode is not None:
        out_shapes.append(jax.ShapeDtypeStruct((N, H // 2, W // 2, cout),
                                               _COMPUTE_DTYPE))
        out_specs.append(pl.BlockSpec((1, th // 2, W // 2, cout),
                                      lambda n, r: (n, r, 0, 0)))

    if pre_im2col:
        x_in = x
        x_spec = pl.BlockSpec((1, th, W, kdim), lambda n, r: (n, r, 0, 0))
        scratch = []
    else:
        # One zero-pad in HBM (cheap XLA op) instead of an in-kernel slab.
        x_in = jnp.pad(x, ((0, 0), (1, 1), (1, 1), (0, 0)))
        # Whole padded image, index_map invariant in r -> DMA'd once / image.
        x_spec = pl.BlockSpec((1, H + 2, W + 2, cin), lambda n, r: (n, 0, 0, 0))
        scratch = [pltpu.VMEM((th * W, kdim), _COMPUTE_DTYPE)]

    kernel = functools.partial(
        _conv_kernel, tile_h=th, width=W, cin=cin, kdim=kdim, cout=cout,
        taps=(1 if pre_im2col else 9), pool_mode=pool_mode,
        emit_relu=emit_relu)

    multi = len(out_shapes) > 1
    outs = pl.pallas_call(
        kernel,
        out_shape=tuple(out_shapes) if multi else out_shapes[0],
        grid_spec=pltpu.PrefetchScalarGridSpec(
            num_scalar_prefetch=0,
            grid=(N, nh),
            in_specs=[
                x_spec,
                pl.BlockSpec((kdim, cout), lambda n, r: (0, 0)),
                pl.BlockSpec((1, cout), lambda n, r: (0, 0)),
            ],
            out_specs=tuple(out_specs) if multi else out_specs[0],
            scratch_shapes=scratch,
        ),
        compiler_params=pltpu.CompilerParams(
            dimension_semantics=("parallel", "parallel"),
            vmem_limit_bytes=_vmem_limit_bytes(),
        ),
    )(x_in, w2d, b2)
    return list(outs) if multi else [outs]


def _im2col_small_cin(x):
    """Wrapper-side im2col for the Cin=3 first layer: (N,H,W,C) -> (N,H,W,9C).

    Tap order (dh, dw, c) matches the (3,3,Cin,Cout) -> (9*Cin, Cout) weight
    reshape used in prepare_params()."""
    N, H, W, C = x.shape
    xp = jnp.pad(x, ((0, 0), (1, 1), (1, 1), (0, 0)))
    taps = [xp[:, dh:dh + H, dw:dw + W, :]
            for dh in range(3) for dw in range(3)]
    return jnp.concatenate(taps, axis=-1)


def _pool2x2_xla(x, avg=False):
    # TODO(synk): odd-spatial-dim pooling edge case only; every even-sized VGG
    # activation uses the fused Pallas conv+pool path instead.
    x32 = x.astype(jnp.float32)
    if avg:
        p = lax.reduce_window(x32, 0.0, lax.add, (1, 2, 2, 1), (1, 2, 2, 1),
                              "VALID") * 0.25
    else:
        p = lax.reduce_window(x32, -jnp.inf, lax.max, (1, 2, 2, 1),
                              (1, 2, 2, 1), "VALID")
    return p.astype(x.dtype)


# ----------------------------------------------------------------------------
# VGG16 configuration (matches the nn.Module __init__ exactly).
# ----------------------------------------------------------------------------
_VGG_CFG = [
    ("conv1_1", 3, 64), ("conv1_2", 64, 64), ("pool1",),
    ("conv2_1", 64, 128), ("conv2_2", 128, 128), ("pool2",),
    ("conv3_1", 128, 256), ("conv3_2", 256, 256),
    ("conv3_3", 256, 256), ("conv3_4", 256, 256), ("pool3",),
    ("conv4_1", 256, 512), ("conv4_2", 512, 512),
    ("conv4_3", 512, 512), ("conv4_4", 512, 512), ("pool4",),
    ("conv5_1", 512, 512), ("conv5_2", 512, 512),
    ("conv5_3", 512, 512), ("conv5_4", 512, 512), ("pool5",),
]


def init_params(key):
    """Deterministic synthetic weights (HWIO, f32) and zero biases."""
    params = {}
    for item in _VGG_CFG:
        if item[0].startswith("conv"):
            name, cin, cout = item
            key, kw = jax.random.split(key)
            scale = 1.0 / jnp.sqrt(9.0 * cin)
            w = jax.random.normal(kw, (3, 3, cin, cout), jnp.float32) * scale
            b = jnp.zeros((cout,), jnp.float32)
            params[name] = (w, b)
    return params


def prepare_params(raw_params):
    """Kernel-side layout: bf16 weights folded to (9*Cin, Cout), f32 bias."""
    prepped = {}
    for name, (w, b) in raw_params.items():
        cin, cout = w.shape[2], w.shape[3]
        prepped[name] = (
            w.astype(_COMPUTE_DTYPE).reshape(9 * cin, cout),
            b.reshape(1, cout).astype(jnp.float32),
        )
    return prepped


def vgg16_forward(x_nchw, params, layers, pool="max"):
    """Mirrors VGG16.forward(x, layers); returns a list of NCHW f32 maps."""
    requested = set(layers)
    cur = jnp.transpose(x_nchw, (0, 2, 3, 1)).astype(_COMPUTE_DTYPE)
    out = {}
    i = 0
    while i < len(_VGG_CFG):
        name = _VGG_CFG[i][0]
        w2d, b2 = params[name]
        relu_name = "relu" + name[4:]
        nxt = _VGG_CFG[i + 1][0] if i + 1 < len(_VGG_CFG) else ""
        pool_next = nxt.startswith("pool")

        pre = (w2d.shape[0] == 27)                  # conv1_1 (Cin = 3)
        xin = _im2col_small_cin(cur) if pre else cur
        H, W = cur.shape[1], cur.shape[2]

        if pool_next and H % 2 == 0 and W % 2 == 0:
            emit_relu = relu_name in requested
            res = conv3x3_relu(xin, w2d, b2, pool_mode=pool,
                               emit_relu=emit_relu, pre_im2col=pre)
            if emit_relu:
                out[relu_name] = res[0]
            cur = res[-1]
            out[nxt] = cur
            i += 2
        else:
            (cur,) = conv3x3_relu(xin, w2d, b2, pool_mode=None,
                                  emit_relu=True, pre_im2col=pre)
            out[relu_name] = cur
            i += 1
            if pool_next:
                cur = _pool2x2_xla(cur, avg=(pool == "avg"))
                out[nxt] = cur
                i += 1
    return [jnp.transpose(out[k], (0, 3, 1, 2)).astype(jnp.float32)
            for k in layers]


# ----------------------------------------------------------------------------
# Pure-JAX matched-precision reference (bf16 data, f32 accumulation).
# ----------------------------------------------------------------------------
def ref_forward(x_nchw, raw_params, layers, pool="max"):
    cur = jnp.transpose(x_nchw, (0, 2, 3, 1)).astype(_COMPUTE_DTYPE)
    out = {}
    for item in _VGG_CFG:
        name = item[0]
        if name.startswith("conv"):
            w, b = raw_params[name]
            y = lax.conv_general_dilated(
                cur, w.astype(_COMPUTE_DTYPE), (1, 1), "SAME",
                dimension_numbers=("NHWC", "HWIO", "NHWC"),
                preferred_element_type=jnp.float32)
            cur = jnp.maximum(y + b, 0.0).astype(_COMPUTE_DTYPE)
            out["relu" + name[4:]] = cur
        else:
            x32 = cur.astype(jnp.float32)
            if pool == "max":
                p = lax.reduce_window(x32, -jnp.inf, lax.max,
                                      (1, 2, 2, 1), (1, 2, 2, 1), "VALID")
            else:
                p = lax.reduce_window(x32, 0.0, lax.add,
                                      (1, 2, 2, 1), (1, 2, 2, 1),
                                      "VALID") * 0.25
            cur = p.astype(_COMPUTE_DTYPE)
            out[name] = cur
    return [jnp.transpose(out[k], (0, 3, 1, 2)).astype(jnp.float32)
            for k in layers]


if __name__ == "__main__":
    key = jax.random.PRNGKey(0)
    kx, kp = jax.random.split(key)

    # Small but consistent with the module: 3 input channels, spatial 32 so
    # all five 2x2 pools are valid (32 -> 16 -> 8 -> 4 -> 2 -> 1).
    N, C, S = 2, 3, 32
    x = jax.random.normal(kx, (N, C, S, S), jnp.float32)
    raw_params = init_params(kp)
    params = prepare_params(raw_params)

    # Exercises: conv1_1 pre-im2col path, dual-output fused conv+pool
    # (relu1_2/pool1, relu5_4/pool5), pool-only fusion (pool3), plain convs.
    layers = ["relu1_1", "relu1_2", "pool3", "relu4_2", "relu5_4", "pool5"]

    outs = jax.block_until_ready(vgg16_forward(x, params, layers, pool="max"))
    refs = jax.block_until_ready(ref_forward(x, raw_params, layers, pool="max"))

    for name, o, r in zip(layers, outs, refs):
        assert o.shape == r.shape, (name, o.shape, r.shape)
        err = float(jnp.max(jnp.abs(o - r)))
        assert jnp.allclose(o, r, rtol=3e-2, atol=3e-2), (name, err)

    print("KERNEL_OK")
</pallas_src>

<mosaic_0001>
module attributes {stable_mosaic.version = 11 : i64} {
  func.func @_conv_kernel(%arg0: i32, %arg1: i32, %arg2: memref<1x32x32x27xbf16, #tpu.memory_space<vmem>>, %arg3: memref<27x64xbf16, #tpu.memory_space<vmem>>, %arg4: memref<1x64xf32, #tpu.memory_space<vmem>>, %arg5: memref<1x32x32x64xbf16, #tpu.memory_space<vmem>>) attributes {dimension_semantics = [#tpu.dimension_semantics<parallel>, #tpu.dimension_semantics<parallel>], iteration_bounds = array<i64: 2, 1>, scalar_prefetch = 0 : i64, scratch_operands = 0 : i64, tpu.core_type = #tpu.core_type<tc>, window_params = [{transform_indices = @transform_0, window_bounds = array<i64: 1, 32, 32, 27>}, {pipeline_mode = #tpu.pipeline_mode<synchronous>, transform_indices = @transform_1, window_bounds = array<i64: 27, 64>}, {pipeline_mode = #tpu.pipeline_mode<synchronous>, transform_indices = @transform_2, window_bounds = array<i64: 1, 64>}, {transform_indices = @transform_3, window_bounds = array<i64: 1, 32, 32, 64>}]} {
    %c0 = arith.constant 0 : index
    %c0_0 = arith.constant 0 : index
    %c0_1 = arith.constant 0 : index
    %c0_2 = arith.constant 0 : index
    %0 = vector.load %arg2[%c0, %c0_0, %c0_1, %c0_2] : memref<1x32x32x27xbf16, #tpu.memory_space<vmem>>, vector<1x32x32x27xbf16>
    %1 = vector.shape_cast %0 : vector<1x32x32x27xbf16> to vector<32x32x27xbf16>
    %2 = vector.shape_cast %1 : vector<32x32x27xbf16> to vector<1024x27xbf16>
    %c0_3 = arith.constant 0 : index
    %c0_4 = arith.constant 0 : index
    %3 = vector.load %arg3[%c0_3, %c0_4] : memref<27x64xbf16, #tpu.memory_space<vmem>>, vector<27x64xbf16>
    %cst = arith.constant dense<0.000000e+00> : vector<1024x64xf32>
    %4 = tpu.matmul %2, %3, %cst {dimension_numbers = #tpu.dot_dimension_numbers<[1], [0], [0], [1], [0, 0, 1, 1], [], []>} : vector<1024x27xbf16>, vector<27x64xbf16>, vector<1024x64xf32> -> vector<1024x64xf32>
    %c0_5 = arith.constant 0 : index
    %c0_6 = arith.constant 0 : index
    %5 = vector.load %arg4[%c0_5, %c0_6] : memref<1x64xf32, #tpu.memory_space<vmem>>, vector<1x64xf32>
    %6 = vector.broadcast %5 : vector<1x64xf32> to vector<1024x64xf32>
    %7 = arith.addf %4, %6 : vector<1024x64xf32>
    %cst_7 = arith.constant 0.000000e+00 : f32
    %8 = vector.broadcast %cst_7 : f32 to vector<1024x64xf32>
    %9 = arith.maximumf %7, %8 : vector<1024x64xf32>
    %10 = vector.shape_cast %9 : vector<1024x64xf32> to vector<1x32x32x64xf32>
    %11 = arith.truncf %10 : vector<1x32x32x64xf32> to vector<1x32x32x64xbf16>
    %c0_8 = arith.constant 0 : index
    %c0_9 = arith.constant 0 : index
    %c0_10 = arith.constant 0 : index
    %c0_11 = arith.constant 0 : index
    %12 = vector.load %arg5[%c0_8, %c0_9, %c0_10, %c0_11] : memref<1x32x32x64xbf16, #tpu.memory_space<vmem>>, vector<1x32x32x64xbf16>
    tpu.vector_store %arg5[%c0_8, %c0_9, %c0_10, %c0_11], %11 {strides = array<i32>} : memref<1x32x32x64xbf16, #tpu.memory_space<vmem>>, vector<1x32x32x64xbf16>,
    return
  }
  func.func @transform_0(%arg0: i32, %arg1: i32) -> (i32, i32, i32, i32) {
    %c0_i32 = arith.constant 0 : i32
    %c0_i32_0 = arith.constant 0 : i32
    %c0_i32_1 = arith.constant 0 : i32
    return %arg0, %arg1, %c0_i32, %c0_i32_0 : i32, i32, i32, i32
  }
  func.func @transform_1(%arg0: i32, %arg1: i32) -> (i32, i32) {
    %c0_i32 = arith.constant 0 : i32
    %c0_i32_0 = arith.constant 0 : i32
    %c0_i32_1 = arith.constant 0 : i32
    return %c0_i32, %c0_i32_0 : i32, i32
  }
  func.func @transform_2(%arg0: i32, %arg1: i32) -> (i32, i32) {
    %c0_i32 = arith.constant 0 : i32
    %c0_i32_0 = arith.constant 0 : i32
    %c0_i32_1 = arith.constant 0 : i32
    return %c0_i32, %c0_i32_0 : i32, i32
  }
  func.func @transform_3(%arg0: i32, %arg1: i32) -> (i32, i32, i32, i32) {
    %c0_i32 = arith.constant 0 : i32
    %c0_i32_0 = arith.constant 0 : i32
    %c0_i32_1 = arith.constant 0 : i32
    return %arg0, %arg1, %c0_i32, %c0_i32_0 : i32, i32, i32, i32
  }
}

</mosaic_0001>

<llo_original>
// kernel: tpu_custom_call.1
$region0: #{tpu_custom_call.1}
  #allocation0 [shape = 'u32[]', space=smem, size = 0x4, offset = 0x4, fixed_abs, tag = 'smem constant byte address 0x4 - core index']
  #allocation1 [shape = 'u32[72,128]{1,0:T(1,128)}', space=vmem, size = 0x9000, scoped, tag = 'internal scratch']
  %s0 = inlined_call_operand.vmem [shape: bf16[2,32,32,27], index: 0, kind: input, shape index: {}]
  %s1 = inlined_call_operand.vmem [shape: bf16[27,64], index: 1, kind: input, shape index: {}]
  %s2 = inlined_call_operand.vmem [shape: f32[1,64], index: 2, kind: input, shape index: {}]
  %s3 = inlined_call_operand.hbm [shape: bf16[2,32,32,64], index: 3, kind: output, shape index: {}]
  %s4 = sld [smem:[#allocation0]]
  $region45: #{tpu_custom_call.1} parent=0
    _
  %s6 = ssub.s32 1, %s4
  %s7 = scalar_select 0, %s6, %s4
  $region1: #{tpu_custom_call.1} parent=0
    #allocation2 [shape = 'u8[524288]{0}', space=vmem, size = 0x80000, scoped, tag = 'output window, operand 0']
    #allocation3 [shape = 's32[2]{0}', space=sflag, size = 0x8, scoped, tag = 'scoped memory for tpu_custom_call.1']
    %8 = vsyncpa [#allocation3], 0
    %s9 = scalar_lea.sflag [#allocation3], 1
    %10 = vsyncpa %s9, 0
    loop: start=0, step=1, limit=4
    $region2: #{tpu_custom_call.1} parent=1 // loop_pre_header
      _
    $region3: #{tpu_custom_call.1} parent=1 // loop_header
      %s12 = sphi 0, %s16
      %p13 = scmp.ge.s32.totalorder %s12, 4
      %s19 = sphi 0, %s31
      %s20 = sphi 0, %s27
      %s21 = sphi 0, %s19
      %s22 = sphi 0, %s20
      %s23 = sphi 0, %s21
      %s24 = sphi 0, %s22
      %s36 = sphi 0, %s38
      %s39 = sphi 0, %s36
      %s40 = sphi 0, %s39
      %s56 = sphi 0, %s40
      %s60 = sphi 0, %s60
      %s62 = sphi 0, %s60
      %s63 = sphi 0, %s62
      %s77 = sphi 0, %s63
      %s81 = sphi 0, %s81
      %s83 = sphi 0, %s81
      %s84 = sphi 0, %s83
      %s98 = sphi 0, %s84
      %s106 = sphi 0, %s108
      %s109 = sphi 0, %s106
      %s110 = sphi 0, %s109
      %s126 = sphi 0, %s110
    $region4: #{tpu_custom_call.1} parent=1 // loop_header_branch
      %15 = sbr.rel (%p13) target = $region8
    $region5: #{tpu_custom_call.1} parent=1 // loop_body
      %s17 = ssub.s32 %s12, 1
      %s18 = ssub.s32 %s12, 2
      %s25 = sadd.s32 1, %s20
      %p26 = scmp.ge.s32.totalorder %s25, 1
      %s27 = scalar_select %p26, 0, %s25
      %s28 = sadd.s32 1, %s19
      %s29 = scalar_select %p26, %s28, %s19
      %p30 = scmp.ge.s32.totalorder %s29, 2
      %s31 = scalar_select %p30, 0, %s29
      %s32 = ssub.s32 %s19, %s31
      %s33 = ssub.s32 %s20, %s27
      %s34 = sor.u32 %s32, %s33
      %p35 = scmp.eq.s32.totalorder %s34, 0
      %s37 = sadd.s32 %s36, 1
      %s38 = scalar_select %p35, %s36, %s37
      %p41 = pneg %p35
      %p42 = scmp.eq.s32.totalorder %s12, 1
      %p43 = por %p41, %p42
      %p44 = scmp.ne.s32.totalorder %s36, %s39
      %p45 = scmp.eq.s32.totalorder %s12, 0
      %p46 = por %p44, %p45
      %p47 = scmp.ne.s32.totalorder %s36, %s39
      %p48 = scmp.eq.s32.totalorder %s17, 1
      %p49 = por %p47, %p48
      %p50 = scmp.ne.s32.totalorder %s39, %s40
      %p51 = scmp.eq.s32.totalorder %s17, 0
      %p52 = por %p50, %p51
      %p53 = scmp.ne.s32.totalorder %s39, %s40
      %p54 = scmp.eq.s32.totalorder %s18, 1
      %p55 = por %p53, %p54
      %p57 = scmp.ne.s32.totalorder %s40, %s56
      %p58 = scmp.eq.s32.totalorder %s18, 0
      %p59 = por %p57, %p58
      %s61 = sadd.s32 %s60, 1
      %p64 = scmp.eq.s32.totalorder %s12, 1
      %p65 = scmp.ne.s32.totalorder %s60, %s62
      %p66 = scmp.eq.s32.totalorder %s12, 0
      %p67 = por %p65, %p66
      %p68 = scmp.ne.s32.totalorder %s60, %s62
      %p69 = scmp.eq.s32.totalorder %s17, 1
      %p70 = por %p68, %p69
      %p71 = scmp.ne.s32.totalorder %s62, %s63
      %p72 = scmp.eq.s32.totalorder %s17, 0
      %p73 = por %p71, %p72
      %p74 = scmp.ne.s32.totalorder %s62, %s63
      %p75 = scmp.eq.s32.totalorder %s18, 1
      %p76 = por %p74, %p75
      %p78 = scmp.ne.s32.totalorder %s63, %s77
      %p79 = scmp.eq.s32.totalorder %s18, 0
      %p80 = por %p78, %p79
      %s82 = sadd.s32 %s81, 1
      %p85 = scmp.eq.s32.totalorder %s12, 1
      %p86 = scmp.ne.s32.totalorder %s81, %s83
      %p87 = scmp.eq.s32.totalorder %s12, 0
      %p88 = por %p86, %p87
      %p89 = scmp.ne.s32.totalorder %s81, %s83
      %p90 = scmp.eq.s32.totalorder %s17, 1
      %p91 = por %p89, %p90
      %p92 = scmp.ne.s32.totalorder %s83, %s84
      %p93 = scmp.eq.s32.totalorder %s17, 0
      %p94 = por %p92, %p93
      %p95 = scmp.ne.s32.totalorder %s83, %s84
      %p96 = scmp.eq.s32.totalorder %s18, 1
      %p97 = por %p95, %p96
      %p99 = scmp.ne.s32.totalorder %s84, %s98
      %p100 = scmp.eq.s32.totalorder %s18, 0
      %p101 = por %p99, %p100
      %s102 = ssub.s32 %s19, %s31
      %s103 = ssub.s32 %s20, %s27
      %s104 = sor.u32 %s102, %s103
      %p105 = scmp.eq.s32.totalorder %s104, 0
      %s107 = sadd.s32 %s106, 1
      %s108 = scalar_select %p105, %s106, %s107
      %p111 = pneg %p105
      %p112 = scmp.eq.s32.totalorder %s12, 1
      %p113 = por %p111, %p112
      %p114 = scmp.ne.s32.totalorder %s106, %s109
      %p115 = scmp.eq.s32.totalorder %s12, 0
      %p116 = por %p114, %p115
      %p117 = scmp.ne.s32.totalorder %s106, %s109
      %p118 = scmp.eq.s32.totalorder %s17, 1
      %p119 = por %p117, %p118
      %p120 = scmp.ne.s32.totalorder %s109, %s110
      %p121 = scmp.eq.s32.totalorder %s17, 0
      %p122 = por %p120, %p121
      %p123 = scmp.ne.s32.totalorder %s109, %s110
      %p124 = scmp.eq.s32.totalorder %s18, 1
      %p125 = por %p123, %p124
      %p127 = scmp.ne.s32.totalorder %s110, %s126
      %p128 = scmp.eq.s32.totalorder %s18, 0
      %p129 = por %p127, %p128
      %p130 = scmp.le.s32.totalorder 1, %s12
      %p131 = scmp.lt.s32.totalorder %s12, 3
      %p132 = pnand %p130, %p131
      %p133 = pneg %p132
      // Predicated region
      $region9: #{tpu_custom_call.1} parent=5 // pred_check
        _
      $region10: #{tpu_custom_call.1} parent=5 // pred_check_branch
        %135 = sbr.rel (%p132) target = $region12
      $region11: #{tpu_custom_call.1} parent=5 // pred_region
        %s136 = ssub.s32 %s12, 1
        // Predicated region
        $region13: #{tpu_custom_call.1} parent=11 // pred_check
          %p137 = pneg %p73
        $region14: #{tpu_custom_call.1} parent=11 // pred_check_branch
          %139 = sbr.rel (%p137) target = $region16
        $region15: #{tpu_custom_call.1} parent=11 // pred_region
          _
        $region16: #{tpu_custom_call.1} parent=11 // pred_fallthru
          _
        // Predicated region
        $region17: #{tpu_custom_call.1} parent=11 // pred_check
          %p140 = pneg %p94
        $region18: #{tpu_custom_call.1} parent=11 // pred_check_branch
          %142 = sbr.rel (%p140) target = $region20
        $region19: #{tpu_custom_call.1} parent=11 // pred_region
          _
        $region20: #{tpu_custom_call.1} parent=11 // pred_fallthru
          _
      $region12: #{tpu_custom_call.1} parent=5 // pred_fallthru
        _
      %p143 = scmp.lt.s32.totalorder %s12, 2
      // Predicated region
      $region21: #{tpu_custom_call.1} parent=5 // pred_check
        %p144 = pneg %p143
      $region22: #{tpu_custom_call.1} parent=5 // pred_check_branch
        %146 = sbr.rel (%p144) target = $region24
      $region23: #{tpu_custom_call.1} parent=5 // pred_region
        // Predicated region
        $region25: #{tpu_custom_call.1} parent=23 // pred_check
          %p147 = pneg %p46
        $region26: #{tpu_custom_call.1} parent=23 // pred_check_branch
          %149 = sbr.rel (%p147) target = $region28
        $region27: #{tpu_custom_call.1} parent=23 // pred_region
          %s150 = smul.u32 32, %s20
          %p151 = scmp.lt.s32.totalorder %s19, 1
          %s152 = scalar_select %p151, %s19, 1
          %p153 = scmp.lt.s32.totalorder %s150, 31
          %s154 = scalar_select %p153, %s150, 31
          %s155 = smul.addr %s154, 4
          %s156 = smul.addr %s152, 128
          %s157 = sadd.s32 %s155, %s156
          %s158 = smul.addr %s157, 4
          %s159 = scalar_lea.vmem %s0, %s158
          %s160 = smul.u32 32, %s20
        $region28: #{tpu_custom_call.1} parent=23 // pred_fallthru
          _
      $region24: #{tpu_custom_call.1} parent=5 // pred_fallthru
        _
      %p161 = scmp.le.s32.totalorder 1, %s12
      %p162 = scmp.lt.s32.totalorder %s12, 3
      %p163 = pnand %p161, %p162
      %p164 = pneg %p163
      // Predicated region
      $region29: #{tpu_custom_call.1} parent=5 // pred_check
        _
      $region30: #{tpu_custom_call.1} parent=5 // pred_check_branch
        %166 = sbr.rel (%p163) target = $region32
      $region31: #{tpu_custom_call.1} parent=5 // pred_region
        %s167 = ssub.s32 %s12, 1
        %s168 = smul.u32 32, %s22
        %p169 = scmp.lt.s32.totalorder %s21, 1
        %s170 = scalar_select %p169, %s21, 1
        %p171 = scmp.lt.s32.totalorder %s168, 31
        %s172 = scalar_select %p171, %s168, 31
        %s173 = smul.addr %s172, 4
        %s174 = smul.addr %s170, 128
        %s175 = sadd.s32 %s173, %s174
        %s176 = smul.addr %s175, 4
        %s177 = scalar_lea.vmem %s0, %s176
        %p178 = pneg %p52
        %p179 = pneg %p49
        %p180 = pneg %p73
        %p181 = pneg %p70
        %p182 = pneg %p94
        %p183 = pneg %p91
        %p184 = pneg %p122
        %p185 = pneg %p119
        %s186 = sand.u32 %s109, 1
        %s187 = scalar_lea.sflag [#allocation3], %s186
        %s188 = sand.u32 %s109, 1
        %s189 = smul.addr %s188, 512
        %s190 = scalar_lea.vmem [#allocation2], %s189
        %s191 = smul.u32 32, %s22
        %p192 = scmp.lt.s32.totalorder %s21, 1
        %s193 = scalar_select %p192, %s21, 1
        %p194 = scmp.lt.s32.totalorder %s191, 31
        %s195 = scalar_select %p194, %s191, 31
        %s196 = smul.addr %s195, 4
        %s197 = smul.addr %s193, 128
        %s198 = sadd.s32 %s196, %s197
        %s199 = smul.addr %s198, 4
        %s200 = scalar_lea.vmem %s0, %s199
        %s201 = smul.u32 32, %s22
        %s202 = smul.u32 32, %s22
        %v204 = vld [vmem:[%s200] sm:$0xf]
        %v205 = vld [vmem:[%s200 + $0x4] sm:$0xf]
        %v206 = vld [vmem:[%s200 + $0x8] sm:$0xf]
        %v207 = vld [vmem:[%s200 + $0xc] sm:$0xf]
        %v208 = vld [vmem:[%s200 + $0x10] sm:$0xf]
        %v209 = vld [vmem:[%s200 + $0x14] sm:$0xf]
        %v210 = vld [vmem:[%s200 + $0x18] sm:$0xf]
        %v211 = vld [vmem:[%s200 + $0x1c] sm:$0xf]
        %v212 = vld [vmem:[%s200 + $0x20] sm:$0xf]
        %v213 = vld [vmem:[%s200 + $0x24] sm:$0xf]
        %v214 = vld [vmem:[%s200 + $0x28] sm:$0xf]
        %v215 = vld [vmem:[%s200 + $0x2c] sm:$0xf]
        %v216 = vld [vmem:[%s200 + $0x30] sm:$0xf]
        %v217 = vld [vmem:[%s200 + $0x34] sm:$0xf]
        %v218 = vld [vmem:[%s200 + $0x38] sm:$0xf]
        %v219 = vld [vmem:[%s200 + $0x3c] sm:$0xf]
        %v220 = vld [vmem:[%s200 + $0x40] sm:$0xf]
        %v221 = vld [vmem:[%s200 + $0x44] sm:$0xf]
        %v222 = vld [vmem:[%s200 + $0x48] sm:$0xf]
        %v223 = vld [vmem:[%s200 + $0x4c] sm:$0xf]
        %v224 = vld [vmem:[%s200 + $0x50] sm:$0xf]
        %v225 = vld [vmem:[%s200 + $0x54] sm:$0xf]
        %v226 = vld [vmem:[%s200 + $0x58] sm:$0xf]
        %v227 = vld [vmem:[%s200 + $0x5c] sm:$0xf]
        %v228 = vld [vmem:[%s200 + $0x60] sm:$0xf]
        %v229 = vld [vmem:[%s200 + $0x64] sm:$0xf]
        %v230 = vld [vmem:[%s200 + $0x68] sm:$0xf]
        %v231 = vld [vmem:[%s200 + $0x6c] sm:$0xf]
        %v232 = vld [vmem:[%s200 + $0x70] sm:$0xf]
        %v233 = vld [vmem:[%s200 + $0x74] sm:$0xf]
        %v234 = vld [vmem:[%s200 + $0x78] sm:$0xf]
        %v235 = vld [vmem:[%s200 + $0x7c] sm:$0xf]
        %v236 = vld [vmem:[%s200 + $0x80] sm:$0xf]
        %v237 = vld [vmem:[%s200 + $0x84] sm:$0xf]
        %v238 = vld [vmem:[%s200 + $0x88] sm:$0xf]
        %v239 = vld [vmem:[%s200 + $0x8c] sm:$0xf]
        %v240 = vld [vmem:[%s200 + $0x90] sm:$0xf]
        %v241 = vld [vmem:[%s200 + $0x94] sm:$0xf]
        %v242 = vld [vmem:[%s200 + $0x98] sm:$0xf]
        %v243 = vld [vmem:[%s200 + $0x9c] sm:$0xf]
        %v244 = vld [vmem:[%s200 + $0xa0] sm:$0xf]
        %v245 = vld [vmem:[%s200 + $0xa4] sm:$0xf]
        %v246 = vld [vmem:[%s200 + $0xa8] sm:$0xf]
        %v247 = vld [vmem:[%s200 + $0xac] sm:$0xf]
        %v248 = vld [vmem:[%s200 + $0xb0] sm:$0xf]
        %v249 = vld [vmem:[%s200 + $0xb4] sm:$0xf]
        %v250 = vld [vmem:[%s200 + $0xb8] sm:$0xf]
        %v251 = vld [vmem:[%s200 + $0xbc] sm:$0xf]
        %v252 = vld [vmem:[%s200 + $0xc0] sm:$0xf]
        %v253 = vld [vmem:[%s200 + $0xc4] sm:$0xf]
        %v254 = vld [vmem:[%s200 + $0xc8] sm:$0xf]
        %v255 = vld [vmem:[%s200 + $0xcc] sm:$0xf]
        %v256 = vld [vmem:[%s200 + $0xd0] sm:$0xf]
        %v257 = vld [vmem:[%s200 + $0xd4] sm:$0xf]
        %v258 = vld [vmem:[%s200 + $0xd8] sm:$0xf]
        %v259 = vld [vmem:[%s200 + $0xdc] sm:$0xf]
        %v260 = vld [vmem:[%s200 + $0xe0] sm:$0xf]
        %v261 = vld [vmem:[%s200 + $0xe4] sm:$0xf]
        %v262 = vld [vmem:[%s200 + $0xe8] sm:$0xf]
        %v263 = vld [vmem:[%s200 + $0xec] sm:$0xf]
        %v264 = vld [vmem:[%s200 + $0xf0] sm:$0xf]
        %v265 = vld [vmem:[%s200 + $0xf4] sm:$0xf]
        %v266 = vld [vmem:[%s200 + $0xf8] sm:$0xf]
        %v267 = vld [vmem:[%s200 + $0xfc] sm:$0xf]
        %v268 = vld [vmem:[%s200 + $0x100] sm:$0xf]
        %v269 = vld [vmem:[%s200 + $0x104] sm:$0xf]
        %v270 = vld [vmem:[%s200 + $0x108] sm:$0xf]
        %v271 = vld [vmem:[%s200 + $0x10c] sm:$0xf]
        %v272 = vld [vmem:[%s200 + $0x110] sm:$0xf]
        %v273 = vld [vmem:[%s200 + $0x114] sm:$0xf]
        %v274 = vld [vmem:[%s200 + $0x118] sm:$0xf]
        %v275 = vld [vmem:[%s200 + $0x11c] sm:$0xf]
        %v276 = vld [vmem:[%s200 + $0x120] sm:$0xf]
        %v277 = vld [vmem:[%s200 + $0x124] sm:$0xf]
        %v278 = vld [vmem:[%s200 + $0x128] sm:$0xf]
        %v279 = vld [vmem:[%s200 + $0x12c] sm:$0xf]
        %v280 = vld [vmem:[%s200 + $0x130] sm:$0xf]
        %v281 = vld [vmem:[%s200 + $0x134] sm:$0xf]
        %v282 = vld [vmem:[%s200 + $0x138] sm:$0xf]
        %v283 = vld [vmem:[%s200 + $0x13c] sm:$0xf]
        %v284 = vld [vmem:[%s200 + $0x140] sm:$0xf]
        %v285 = vld [vmem:[%s200 + $0x144] sm:$0xf]
        %v286 = vld [vmem:[%s200 + $0x148] sm:$0xf]
        %v287 = vld [vmem:[%s200 + $0x14c] sm:$0xf]
        %v288 = vld [vmem:[%s200 + $0x150] sm:$0xf]
        %v289 = vld [vmem:[%s200 + $0x154] sm:$0xf]
        %v290 = vld [vmem:[%s200 + $0x158] sm:$0xf]
        %v291 = vld [vmem:[%s200 + $0x15c] sm:$0xf]
        %v292 = vld [vmem:[%s200 + $0x160] sm:$0xf]
        %v293 = vld [vmem:[%s200 + $0x164] sm:$0xf]
        %v294 = vld [vmem:[%s200 + $0x168] sm:$0xf]
        %v295 = vld [vmem:[%s200 + $0x16c] sm:$0xf]
        %v296 = vld [vmem:[%s200 + $0x170] sm:$0xf]
        %v297 = vld [vmem:[%s200 + $0x174] sm:$0xf]
        %v298 = vld [vmem:[%s200 + $0x178] sm:$0xf]
        %v299 = vld [vmem:[%s200 + $0x17c] sm:$0xf]
        %v300 = vld [vmem:[%s200 + $0x180] sm:$0xf]
        %v301 = vld [vmem:[%s200 + $0x184] sm:$0xf]
        %v302 = vld [vmem:[%s200 + $0x188] sm:$0xf]
        %v303 = vld [vmem:[%s200 + $0x18c] sm:$0xf]
        %v304 = vld [vmem:[%s200 + $0x190] sm:$0xf]
        %v305 = vld [vmem:[%s200 + $0x194] sm:$0xf]
        %v306 = vld [vmem:[%s200 + $0x198] sm:$0xf]
        %v307 = vld [vmem:[%s200 + $0x19c] sm:$0xf]
        %v308 = vld [vmem:[%s200 + $0x1a0] sm:$0xf]
        %v309 = vld [vmem:[%s200 + $0x1a4] sm:$0xf]
        %v310 = vld [vmem:[%s200 + $0x1a8] sm:$0xf]
        %v311 = vld [vmem:[%s200 + $0x1ac] sm:$0xf]
        %v312 = vld [vmem:[%s200 + $0x1b0] sm:$0xf]
        %v313 = vld [vmem:[%s200 + $0x1b4] sm:$0xf]
        %v314 = vld [vmem:[%s200 + $0x1b8] sm:$0xf]
        %v315 = vld [vmem:[%s200 + $0x1bc] sm:$0xf]
        %v316 = vld [vmem:[%s200 + $0x1c0] sm:$0xf]
        %v317 = vld [vmem:[%s200 + $0x1c4] sm:$0xf]
        %v318 = vld [vmem:[%s200 + $0x1c8] sm:$0xf]
        %v319 = vld [vmem:[%s200 + $0x1cc] sm:$0xf]
        %v320 = vld [vmem:[%s200 + $0x1d0] sm:$0xf]
        %v321 = vld [vmem:[%s200 + $0x1d4] sm:$0xf]
        %v322 = vld [vmem:[%s200 + $0x1d8] sm:$0xf]
        %v323 = vld [vmem:[%s200 + $0x1dc] sm:$0xf]
        %v324 = vld [vmem:[%s200 + $0x1e0] sm:$0xf]
        %v325 = vld [vmem:[%s200 + $0x1e4] sm:$0xf]
        %v326 = vld [vmem:[%s200 + $0x1e8] sm:$0xf]
        %v327 = vld [vmem:[%s200 + $0x1ec] sm:$0xf]
        %v328 = vld [vmem:[%s200 + $0x1f0] sm:$0xf]
        %v329 = vld [vmem:[%s200 + $0x1f4] sm:$0xf]
        %v330 = vld [vmem:[%s200 + $0x1f8] sm:$0xf]
        %v331 = vld [vmem:[%s200 + $0x1fc] sm:$0xf]
        %v332 = vld [vmem:[%s1] sm:$0xf]
        %v333 = vld [vmem:[%s1 + $0x4] sm:$0xf]
        %v334 = vld [vmem:[%s1 + $0x8] sm:$0xf]
        %v335 = vld [vmem:[%s1 + $0xc] sm:$0x3]
        %v336 = vld [vmem:[%s2] sm:$0x1]
        %v338 = vperm.slane %v336, 0
        %v468 = vunpack.c.l.b16 %v204
        %v469 = vunpack.c.l.b16 %v205
        %v470 = vunpack.c.l.b16 %v206
        %v471 = vunpack.c.l.b16 %v207
        %v472 = vunpack.c.l.b16 %v208
        %v473 = vunpack.c.l.b16 %v209
        %v474 = vunpack.c.l.b16 %v210
        %v475 = vunpack.c.l.b16 %v211
        %v476 = vunpack.c.l.b16 %v212
        %v477 = vunpack.c.l.b16 %v213
        %v478 = vunpack.c.l.b16 %v214
        %v479 = vunpack.c.l.b16 %v215
        %v480 = vunpack.c.l.b16 %v216
        %v481 = vunpack.c.l.b16 %v217
        %v482 = vunpack.c.l.b16 %v218
        %v483 = vunpack.c.l.b16 %v219
        %v484 = vunpack.c.l.b16 %v220
        %v485 = vunpack.c.l.b16 %v221
        %v486 = vunpack.c.l.b16 %v222
        %v487 = vunpack.c.l.b16 %v223
        %v488 = vunpack.c.l.b16 %v224
        %v489 = vunpack.c.l.b16 %v225
        %v490 = vunpack.c.l.b16 %v226
        %v491 = vunpack.c.l.b16 %v227
        %v492 = vunpack.c.l.b16 %v228
        %v493 = vunpack.c.l.b16 %v229
        %v494 = vunpack.c.l.b16 %v230
        %v495 = vunpack.c.l.b16 %v231
        %v496 = vunpack.c.l.b16 %v232
        %v497 = vunpack.c.l.b16 %v233
        %v498 = vunpack.c.l.b16 %v234
        %v499 = vunpack.c.l.b16 %v235
        %v500 = vunpack.c.l.b16 %v236
        %v501 = vunpack.c.l.b16 %v237
        %v502 = vunpack.c.l.b16 %v238
        %v503 = vunpack.c.l.b16 %v239
        %v504 = vunpack.c.l.b16 %v240
        %v505 = vunpack.c.l.b16 %v241
        %v506 = vunpack.c.l.b16 %v242
        %v507 = vunpack.c.l.b16 %v243
        %v508 = vunpack.c.l.b16 %v244
        %v509 = vunpack.c.l.b16 %v245
        %v510 = vunpack.c.l.b16 %v246
        %v511 = vunpack.c.l.b16 %v247
        %v512 = vunpack.c.l.b16 %v248
        %v513 = vunpack.c.l.b16 %v249
        %v514 = vunpack.c.l.b16 %v250
        %v515 = vunpack.c.l.b16 %v251
        %v516 = vunpack.c.l.b16 %v252
        %v517 = vunpack.c.l.b16 %v253
        %v518 = vunpack.c.l.b16 %v254
        %v519 = vunpack.c.l.b16 %v255
        %v520 = vunpack.c.l.b16 %v256
        %v521 = vunpack.c.l.b16 %v257
        %v522 = vunpack.c.l.b16 %v258
        %v523 = vunpack.c.l.b16 %v259
        %v524 = vunpack.c.l.b16 %v260
        %v525 = vunpack.c.l.b16 %v261
        %v526 = vunpack.c.l.b16 %v262
        %v527 = vunpack.c.l.b16 %v263
        %v528 = vunpack.c.l.b16 %v264
        %v529 = vunpack.c.l.b16 %v265
        %v530 = vunpack.c.l.b16 %v266
        %v531 = vunpack.c.l.b16 %v267
        %v532 = vunpack.c.l.b16 %v268
        %v533 = vunpack.c.l.b16 %v269
        %v534 = vunpack.c.l.b16 %v270
        %v535 = vunpack.c.l.b16 %v271
        %v536 = vunpack.c.l.b16 %v272
        %v537 = vunpack.c.l.b16 %v273
        %v538 = vunpack.c.l.b16 %v274
        %v539 = vunpack.c.l.b16 %v275
        %v540 = vunpack.c.l.b16 %v276
        %v541 = vunpack.c.l.b16 %v277
        %v542 = vunpack.c.l.b16 %v278
        %v543 = vunpack.c.l.b16 %v279
        %v544 = vunpack.c.l.b16 %v280
        %v545 = vunpack.c.l.b16 %v281
        %v546 = vunpack.c.l.b16 %v282
        %v547 = vunpack.c.l.b16 %v283
        %v548 = vunpack.c.l.b16 %v284
        %v549 = vunpack.c.l.b16 %v285
        %v550 = vunpack.c.l.b16 %v286
        %v551 = vunpack.c.l.b16 %v287
        %v552 = vunpack.c.l.b16 %v288
        %v553 = vunpack.c.l.b16 %v289
        %v554 = vunpack.c.l.b16 %v290
        %v555 = vunpack.c.l.b16 %v291
        %v556 = vunpack.c.l.b16 %v292
        %v557 = vunpack.c.l.b16 %v293
        %v558 = vunpack.c.l.b16 %v294
        %v559 = vunpack.c.l.b16 %v295
        %v560 = vunpack.c.l.b16 %v296
        %v561 = vunpack.c.l.b16 %v297
        %v562 = vunpack.c.l.b16 %v298
        %v563 = vunpack.c.l.b16 %v299
        %v564 = vunpack.c.l.b16 %v300
        %v565 = vunpack.c.l.b16 %v301
        %v566 = vunpack.c.l.b16 %v302
        %v567 = vunpack.c.l.b16 %v303
        %v568 = vunpack.c.l.b16 %v304
        %v569 = vunpack.c.l.b16 %v305
        %v570 = vunpack.c.l.b16 %v306
        %v571 = vunpack.c.l.b16 %v307
        %v572 = vunpack.c.l.b16 %v308
        %v573 = vunpack.c.l.b16 %v309
        %v574 = vunpack.c.l.b16 %v310
        %v575 = vunpack.c.l.b16 %v311
        %v576 = vunpack.c.l.b16 %v312
        %v577 = vunpack.c.l.b16 %v313
        %v578 = vunpack.c.l.b16 %v314
        %v579 = vunpack.c.l.b16 %v315
        %v580 = vunpack.c.l.b16 %v316
        %v581 = vunpack.c.l.b16 %v317
        %v582 = vunpack.c.l.b16 %v318
        %v583 = vunpack.c.l.b16 %v319
        %v584 = vunpack.c.l.b16 %v320
        %v585 = vunpack.c.l.b16 %v321
        %v586 = vunpack.c.l.b16 %v322
        %v587 = vunpack.c.l.b16 %v323
        %v588 = vunpack.c.l.b16 %v324
        %v589 = vunpack.c.l.b16 %v325
        %v590 = vunpack.c.l.b16 %v326
        %v591 = vunpack.c.l.b16 %v327
        %v592 = vunpack.c.l.b16 %v328
        %v593 = vunpack.c.l.b16 %v329
        %v594 = vunpack.c.l.b16 %v330
        %v595 = vunpack.c.l.b16 %v331
        %v596 = vpack.c.b16 %v469, %v468
        %v597 = vpack.c.b16 %v471, %v470
        %v598 = vpack.c.b16 %v473, %v472
        %v599 = vpack.c.b16 %v475, %v474
        %v600 = vpack.c.b16 %v477, %v476
        %v601 = vpack.c.b16 %v479, %v478
        %v602 = vpack.c.b16 %v481, %v480
        %v603 = vpack.c.b16 %v483, %v482
        %v604 = vpack.c.b16 %v485, %v484
        %v605 = vpack.c.b16 %v487, %v486
        %v606 = vpack.c.b16 %v489, %v488
        %v607 = vpack.c.b16 %v491, %v490
        %v608 = vpack.c.b16 %v493, %v492
        %v609 = vpack.c.b16 %v495, %v494
        %v610 = vpack.c.b16 %v497, %v496
        %v611 = vpack.c.b16 %v499, %v498
        %v612 = vpack.c.b16 %v501, %v500
        %v613 = vpack.c.b16 %v503, %v502
        %v614 = vpack.c.b16 %v505, %v504
        %v615 = vpack.c.b16 %v507, %v506
        %v616 = vpack.c.b16 %v509, %v508
        %v617 = vpack.c.b16 %v511, %v510
        %v618 = vpack.c.b16 %v513, %v512
        %v619 = vpack.c.b16 %v515, %v514
        %v620 = vpack.c.b16 %v517, %v516
        %v621 = vpack.c.b16 %v519, %v518
        %v622 = vpack.c.b16 %v521, %v520
        %v623 = vpack.c.b16 %v523, %v522
        %v624 = vpack.c.b16 %v525, %v524
        %v625 = vpack.c.b16 %v527, %v526
        %v626 = vpack.c.b16 %v529, %v528
        %v627 = vpack.c.b16 %v531, %v530
        %v628 = vpack.c.b16 %v533, %v532
        %v629 = vpack.c.b16 %v535, %v534
        %v630 = vpack.c.b16 %v537, %v536
        %v631 = vpack.c.b16 %v539, %v538
        %v632 = vpack.c.b16 %v541, %v540
        %v633 = vpack.c.b16 %v543, %v542
        %v634 = vpack.c.b16 %v545, %v544
        %v635 = vpack.c.b16 %v547, %v546
        %v636 = vpack.c.b16 %v549, %v548
        %v637 = vpack.c.b16 %v551, %v550
        %v638 = vpack.c.b16 %v553, %v552
        %v639 = vpack.c.b16 %v555, %v554
        %v640 = vpack.c.b16 %v557, %v556
        %v641 = vpack.c.b16 %v559, %v558
        %v642 = vpack.c.b16 %v561, %v560
        %v643 = vpack.c.b16 %v563, %v562
        %v644 = vpack.c.b16 %v565, %v564
        %v645 = vpack.c.b16 %v567, %v566
        %v646 = vpack.c.b16 %v569, %v568
        %v647 = vpack.c.b16 %v571, %v570
        %v648 = vpack.c.b16 %v573, %v572
        %v649 = vpack.c.b16 %v575, %v574
        %v650 = vpack.c.b16 %v577, %v576
        %v651 = vpack.c.b16 %v579, %v578
        %v652 = vpack.c.b16 %v581, %v580
        %v653 = vpack.c.b16 %v583, %v582
        %v654 = vpack.c.b16 %v585, %v584
        %v655 = vpack.c.b16 %v587, %v586
        %v656 = vpack.c.b16 %v589, %v588
        %v657 = vpack.c.b16 %v591, %v590
        %v658 = vpack.c.b16 %v593, %v592
        %v659 = vpack.c.b16 %v595, %v594
        %v664 = vunpack.c.l.b16 %v332
        %v665 = vunpack.c.l.b16 %v333
        %v666 = vunpack.c.l.b16 %v334
        %v667 = vunpack.c.l.b16 %v335
        %v668 = vpack.c.b16 %v665, %v664
        %v669 = vpack.c.b16 %v667, %v666
        %vm671 = vcmask 220160
        %v673 = vsel %vm671, %v596, 0
        %v676 = vsel %vm671, %v597, 0
        %v679 = vsel %vm671, %v598, 0
        %v682 = vsel %vm671, %v599, 0
        %v685 = vsel %vm671, %v600, 0
        %v688 = vsel %vm671, %v601, 0
        %v691 = vsel %vm671, %v602, 0
        %v694 = vsel %vm671, %v603, 0
        %v697 = vsel %vm671, %v604, 0
        %v700 = vsel %vm671, %v605, 0
        %v703 = vsel %vm671, %v606, 0
        %v706 = vsel %vm671, %v607, 0
        %v709 = vsel %vm671, %v608, 0
        %v712 = vsel %vm671, %v609, 0
        %v715 = vsel %vm671, %v610, 0
        %v718 = vsel %vm671, %v611, 0
        %v721 = vsel %vm671, %v612, 0
        %v724 = vsel %vm671, %v613, 0
        %v727 = vsel %vm671, %v614, 0
        %v730 = vsel %vm671, %v615, 0
        %v733 = vsel %vm671, %v616, 0
        %v736 = vsel %vm671, %v617, 0
        %v739 = vsel %vm671, %v618, 0
        %v742 = vsel %vm671, %v619, 0
        %v745 = vsel %vm671, %v620, 0
        %v748 = vsel %vm671, %v621, 0
        %v751 = vsel %vm671, %v622, 0
        %v754 = vsel %vm671, %v623, 0
        %v757 = vsel %vm671, %v624, 0
        %v760 = vsel %vm671, %v625, 0
        %v763 = vsel %vm671, %v626, 0
        %v766 = vsel %vm671, %v627, 0
        %v769 = vsel %vm671, %v628, 0
        %v772 = vsel %vm671, %v629, 0
        %v775 = vsel %vm671, %v630, 0
        %v778 = vsel %vm671, %v631, 0
        %v781 = vsel %vm671, %v632, 0
        %v784 = vsel %vm671, %v633, 0
        %v787 = vsel %vm671, %v634, 0
        %v790 = vsel %vm671, %v635, 0
        %v793 = vsel %vm671, %v636, 0
        %v796 = vsel %vm671, %v637, 0
        %v799 = vsel %vm671, %v638, 0
        %v802 = vsel %vm671, %v639, 0
        %v805 = vsel %vm671, %v640, 0
        %v808 = vsel %vm671, %v641, 0
        %v811 = vsel %vm671, %v642, 0
        %v814 = vsel %vm671, %v643, 0
        %v817 = vsel %vm671, %v644, 0
        %v820 = vsel %vm671, %v645, 0
        %v823 = vsel %vm671, %v646, 0
        %v826 = vsel %vm671, %v647, 0
        %v829 = vsel %vm671, %v648, 0
        %v832 = vsel %vm671, %v649, 0
        %v835 = vsel %vm671, %v650, 0
        %v838 = vsel %vm671, %v651, 0
        %v841 = vsel %vm671, %v652, 0
        %v844 = vsel %vm671, %v653, 0
        %v847 = vsel %vm671, %v654, 0
        %v850 = vsel %vm671, %v655, 0
        %v853 = vsel %vm671, %v656, 0
        %v856 = vsel %vm671, %v657, 0
        %v859 = vsel %vm671, %v658, 0
        %v862 = vsel %vm671, %v659, 0
        %vm864 = vcmask 1044480
        %vm865 = vcmask 1045504
        %v866 = vsel %vm864, 4294967295, 65535
        %v867 = vsel %vm865, %v866, 0
        %v869 = vand.u32 %v669, %v867
        %871 = vmatpush.bf16.msra.mxu0 0
        %872 = vmatpush.bf16.msra.mxu0 0
        %873 = vmatpush.bf16.msra.mxu0 0
        %874 = vmatpush.bf16.msra.mxu0 0
        %875 = vmatpush.bf16.msra.mxu0 0
        %876 = vmatpush.bf16.msra.mxu0 0
        %877 = vmatpush.bf16.msra.mxu0 %v869
        %878 = vmatpush.bf16.msra.mxu0 %v668
        %879 = vmatmul.bf16.gmra.mxu0 %v673
        %v880 = vpop.f32.mrf.mxu0
        %v881 = vadd.f32 %v338, %v880
        %v882 = vpop.f32.mrf.mxu0
        %v883 = vadd.f32 %v338, %v882
        %884 = vmatmul.bf16.gmra.mxu0 %v676
        %v885 = vpop.f32.mrf.mxu0
        %v886 = vadd.f32 %v338, %v885
        %v887 = vpop.f32.mrf.mxu0
        %v888 = vadd.f32 %v338, %v887
        %889 = vmatmul.bf16.gmra.mxu0 %v679
        %v890 = vpop.f32.mrf.mxu0
        %v891 = vadd.f32 %v338, %v890
        %v892 = vpop.f32.mrf.mxu0
        %v893 = vadd.f32 %v338, %v892
        %894 = vmatmul.bf16.gmra.mxu0 %v682
        %v895 = vpop.f32.mrf.mxu0
        %v896 = vadd.f32 %v338, %v895
        %v897 = vpop.f32.mrf.mxu0
        %v898 = vadd.f32 %v338, %v897
        %899 = vmatmul.bf16.gmra.mxu0 %v685
        %v900 = vpop.f32.mrf.mxu0
        %v901 = vadd.f32 %v338, %v900
        %v902 = vpop.f32.mrf.mxu0
        %v903 = vadd.f32 %v338, %v902
        %904 = vmatmul.bf16.gmra.mxu0 %v688
        %v905 = vpop.f32.mrf.mxu0
        %v906 = vadd.f32 %v338, %v905
        %v907 = vpop.f32.mrf.mxu0
        %v908 = vadd.f32 %v338, %v907
        %909 = vmatmul.bf16.gmra.mxu0 %v691
        %v910 = vpop.f32.mrf.mxu0
        %v911 = vadd.f32 %v338, %v910
        %v912 = vpop.f32.mrf.mxu0
        %v913 = vadd.f32 %v338, %v912
        %914 = vmatmul.bf16.gmra.mxu0 %v694
        %v915 = vpop.f32.mrf.mxu0
        %v916 = vadd.f32 %v338, %v915
        %v917 = vpop.f32.mrf.mxu0
        %v918 = vadd.f32 %v338, %v917
        %919 = vmatmul.bf16.gmra.mxu0 %v697
        %v920 = vpop.f32.mrf.mxu0
        %v921 = vadd.f32 %v338, %v920
        %v922 = vpop.f32.mrf.mxu0
        %v923 = vadd.f32 %v338, %v922
        %924 = vmatmul.bf16.gmra.mxu0 %v700
        %v925 = vpop.f32.mrf.mxu0
        %v926 = vadd.f32 %v338, %v925
        %v927 = vpop.f32.mrf.mxu0
        %v928 = vadd.f32 %v338, %v927
        %929 = vmatmul.bf16.gmra.mxu0 %v703
        %v930 = vpop.f32.mrf.mxu0
        %v931 = vadd.f32 %v338, %v930
        %v932 = vpop.f32.mrf.mxu0
        %v933 = vadd.f32 %v338, %v932
        %934 = vmatmul.bf16.gmra.mxu0 %v706
        %v935 = vpop.f32.mrf.mxu0
        %v936 = vadd.f32 %v338, %v935
        %v937 = vpop.f32.mrf.mxu0
        %v938 = vadd.f32 %v338, %v937
        %939 = vmatmul.bf16.gmra.mxu0 %v709
        %v940 = vpop.f32.mrf.mxu0
        %v941 = vadd.f32 %v338, %v940
        %v942 = vpop.f32.mrf.mxu0
        %v943 = vadd.f32 %v338, %v942
        %944 = vmatmul.bf16.gmra.mxu0 %v712
        %v945 = vpop.f32.mrf.mxu0
        %v946 = vadd.f32 %v338, %v945
        %v947 = vpop.f32.mrf.mxu0
        %v948 = vadd.f32 %v338, %v947
        %949 = vmatmul.bf16.gmra.mxu0 %v715
        %v950 = vpop.f32.mrf.mxu0
        %v951 = vadd.f32 %v338, %v950
        %v952 = vpop.f32.mrf.mxu0
        %v953 = vadd.f32 %v338, %v952
        %954 = vmatmul.bf16.gmra.mxu0 %v718
        %v955 = vpop.f32.mrf.mxu0
        %v956 = vadd.f32 %v338, %v955
        %v957 = vpop.f32.mrf.mxu0
        %v958 = vadd.f32 %v338, %v957
        %959 = vmatmul.bf16.gmra.mxu0 %v721
        %v960 = vpop.f32.mrf.mxu0
        %v961 = vadd.f32 %v338, %v960
        %v962 = vpop.f32.mrf.mxu0
        %v963 = vadd.f32 %v338, %v962
        %964 = vmatmul.bf16.gmra.mxu0 %v724
        %v965 = vpop.f32.mrf.mxu0
        %v966 = vadd.f32 %v338, %v965
        %v967 = vpop.f32.mrf.mxu0
        %v968 = vadd.f32 %v338, %v967
        %969 = vmatmul.bf16.gmra.mxu0 %v727
        %v970 = vpop.f32.mrf.mxu0
        %v971 = vadd.f32 %v338, %v970
        %v972 = vpop.f32.mrf.mxu0
        %v973 = vadd.f32 %v338, %v972
        %974 = vmatmul.bf16.gmra.mxu0 %v730
        %v975 = vpop.f32.mrf.mxu0
        %v976 = vadd.f32 %v338, %v975
        %v977 = vpop.f32.mrf.mxu0
        %v978 = vadd.f32 %v338, %v977
        %979 = vmatmul.bf16.gmra.mxu0 %v733
        %v980 = vpop.f32.mrf.mxu0
        %v981 = vadd.f32 %v338, %v980
        %v982 = vpop.f32.mrf.mxu0
        %v983 = vadd.f32 %v338, %v982
        %984 = vmatmul.bf16.gmra.mxu0 %v736
        %v985 = vpop.f32.mrf.mxu0
        %v986 = vadd.f32 %v338, %v985
        %v987 = vpop.f32.mrf.mxu0
        %v988 = vadd.f32 %v338, %v987
        %989 = vmatmul.bf16.gmra.mxu0 %v739
        %v990 = vpop.f32.mrf.mxu0
        %v991 = vadd.f32 %v338, %v990
        %v992 = vpop.f32.mrf.mxu0
        %v993 = vadd.f32 %v338, %v992
        %994 = vmatmul.bf16.gmra.mxu0 %v742
        %v995 = vpop.f32.mrf.mxu0
        %v996 = vadd.f32 %v338, %v995
        %v997 = vpop.f32.mrf.mxu0
        %v998 = vadd.f32 %v338, %v997
        %999 = vmatmul.bf16.gmra.mxu0 %v745
        %v1000 = vpop.f32.mrf.mxu0
        %v1001 = vadd.f32 %v338, %v1000
        %v1002 = vpop.f32.mrf.mxu0
        %v1003 = vadd.f32 %v338, %v1002
        %1004 = vmatmul.bf16.gmra.mxu0 %v748
        %v1005 = vpop.f32.mrf.mxu0
        %v1006 = vadd.f32 %v338, %v1005
        %v1007 = vpop.f32.mrf.mxu0
        %v1008 = vadd.f32 %v338, %v1007
        %1009 = vmatmul.bf16.gmra.mxu0 %v751
        %v1010 = vpop.f32.mrf.mxu0
        %v1011 = vadd.f32 %v338, %v1010
        %v1012 = vpop.f32.mrf.mxu0
        %v1013 = vadd.f32 %v338, %v1012
        %1014 = vmatmul.bf16.gmra.mxu0 %v754
        %v1015 = vpop.f32.mrf.mxu0
        %v1016 = vadd.f32 %v338, %v1015
        %v1017 = vpop.f32.mrf.mxu0
        %v1018 = vadd.f32 %v338, %v1017
        %1019 = vmatmul.bf16.gmra.mxu0 %v757
        %v1020 = vpop.f32.mrf.mxu0
        %v1021 = vadd.f32 %v338, %v1020
        %v1022 = vpop.f32.mrf.mxu0
        %v1023 = vadd.f32 %v338, %v1022
        %1024 = vmatmul.bf16.gmra.mxu0 %v760
        %v1025 = vpop.f32.mrf.mxu0
        %v1026 = vadd.f32 %v338, %v1025
        %v1027 = vpop.f32.mrf.mxu0
        %v1028 = vadd.f32 %v338, %v1027
        %1029 = vmatmul.bf16.gmra.mxu0 %v763
        %v1030 = vpop.f32.mrf.mxu0
        %v1031 = vadd.f32 %v338, %v1030
        %v1032 = vpop.f32.mrf.mxu0
        %v1033 = vadd.f32 %v338, %v1032
        %1034 = vmatmul.bf16.gmra.mxu0 %v766
        %v1035 = vpop.f32.mrf.mxu0
        %v1036 = vadd.f32 %v338, %v1035
        %v1037 = vpop.f32.mrf.mxu0
        %v1038 = vadd.f32 %v338, %v1037
        %1039 = vmatmul.bf16.gmra.mxu0 %v769
        %v1040 = vpop.f32.mrf.mxu0
        %v1041 = vadd.f32 %v338, %v1040
        %v1042 = vpop.f32.mrf.mxu0
        %v1043 = vadd.f32 %v338, %v1042
        %1044 = vmatmul.bf16.gmra.mxu0 %v772
        %v1045 = vpop.f32.mrf.mxu0
        %v1046 = vadd.f32 %v338, %v1045
        %v1047 = vpop.f32.mrf.mxu0
        %v1048 = vadd.f32 %v338, %v1047
        %1049 = vmatmul.bf16.gmra.mxu0 %v775
        %v1050 = vpop.f32.mrf.mxu0
        %v1051 = vadd.f32 %v338, %v1050
        %v1052 = vpop.f32.mrf.mxu0
        %v1053 = vadd.f32 %v338, %v1052
        %1054 = vmatmul.bf16.gmra.mxu0 %v778
        %v1055 = vpop.f32.mrf.mxu0
        %v1056 = vadd.f32 %v338, %v1055
        %v1057 = vpop.f32.mrf.mxu0
        %v1058 = vadd.f32 %v338, %v1057
        %1059 = vmatmul.bf16.gmra.mxu0 %v781
        %v1060 = vpop.f32.mrf.mxu0
        %v1061 = vadd.f32 %v338, %v1060
        %v1062 = vpop.f32.mrf.mxu0
        %v1063 = vadd.f32 %v338, %v1062
        %1064 = vmatmul.bf16.gmra.mxu0 %v784
        %v1065 = vpop.f32.mrf.mxu0
        %v1066 = vadd.f32 %v338, %v1065
        %v1067 = vpop.f32.mrf.mxu0
        %v1068 = vadd.f32 %v338, %v1067
        %1069 = vmatmul.bf16.gmra.mxu0 %v787
        %v1070 = vpop.f32.mrf.mxu0
        %v1071 = vadd.f32 %v338, %v1070
        %v1072 = vpop.f32.mrf.mxu0
        %v1073 = vadd.f32 %v338, %v1072
        %1074 = vmatmul.bf16.gmra.mxu0 %v790
        %v1075 = vpop.f32.mrf.mxu0
        %v1076 = vadd.f32 %v338, %v1075
        %v1077 = vpop.f32.mrf.mxu0
        %v1078 = vadd.f32 %v338, %v1077
        %1079 = vmatmul.bf16.gmra.mxu0 %v793
        %v1080 = vpop.f32.mrf.mxu0
        %v1081 = vadd.f32 %v338, %v1080
        %v1082 = vpop.f32.mrf.mxu0
        %v1083 = vadd.f32 %v338, %v1082
        %1084 = vmatmul.bf16.gmra.mxu0 %v796
        %v1085 = vpop.f32.mrf.mxu0
        %v1086 = vadd.f32 %v338, %v1085
        %v1087 = vpop.f32.mrf.mxu0
        %v1088 = vadd.f32 %v338, %v1087
        %1089 = vmatmul.bf16.gmra.mxu0 %v799
        %v1090 = vpop.f32.mrf.mxu0
        %v1091 = vadd.f32 %v338, %v1090
        %v1092 = vpop.f32.mrf.mxu0
        %v1093 = vadd.f32 %v338, %v1092
        %1094 = vmatmul.bf16.gmra.mxu0 %v802
        %v1095 = vpop.f32.mrf.mxu0
        %v1096 = vadd.f32 %v338, %v1095
        %v1097 = vpop.f32.mrf.mxu0
        %v1098 = vadd.f32 %v338, %v1097
        %1099 = vmatmul.bf16.gmra.mxu0 %v805
        %v1100 = vpop.f32.mrf.mxu0
        %v1101 = vadd.f32 %v338, %v1100
        %v1102 = vpop.f32.mrf.mxu0
        %v1103 = vadd.f32 %v338, %v1102
        %1104 = vmatmul.bf16.gmra.mxu0 %v808
        %v1105 = vpop.f32.mrf.mxu0
        %v1106 = vadd.f32 %v338, %v1105
        %v1107 = vpop.f32.mrf.mxu0
        %v1108 = vadd.f32 %v338, %v1107
        %1109 = vmatmul.bf16.gmra.mxu0 %v811
        %v1110 = vpop.f32.mrf.mxu0
        %v1111 = vadd.f32 %v338, %v1110
        %v1112 = vpop.f32.mrf.mxu0
        %v1113 = vadd.f32 %v338, %v1112
        %1114 = vmatmul.bf16.gmra.mxu0 %v814
        %v1115 = vpop.f32.mrf.mxu0
        %v1116 = vadd.f32 %v338, %v1115
        %v1117 = vpop.f32.mrf.mxu0
        %v1118 = vadd.f32 %v338, %v1117
        %1119 = vmatmul.bf16.gmra.mxu0 %v817
        %v1120 = vpop.f32.mrf.mxu0
        %v1121 = vadd.f32 %v338, %v1120
        %v1122 = vpop.f32.mrf.mxu0
        %v1123 = vadd.f32 %v338, %v1122
        %1124 = vmatmul.bf16.gmra.mxu0 %v820
        %v1125 = vpop.f32.mrf.mxu0
        %v1126 = vadd.f32 %v338, %v1125
        %v1127 = vpop.f32.mrf.mxu0
        %v1128 = vadd.f32 %v338, %v1127
        %1129 = vmatmul.bf16.gmra.mxu0 %v823
        %v1130 = vpop.f32.mrf.mxu0
        %v1131 = vadd.f32 %v338, %v1130
        %v1132 = vpop.f32.mrf.mxu0
        %v1133 = vadd.f32 %v338, %v1132
        %1134 = vmatmul.bf16.gmra.mxu0 %v826
        %v1135 = vpop.f32.mrf.mxu0
        %v1136 = vadd.f32 %v338, %v1135
        %v1137 = vpop.f32.mrf.mxu0
        %v1138 = vadd.f32 %v338, %v1137
        %1139 = vmatmul.bf16.gmra.mxu0 %v829
        %v1140 = vpop.f32.mrf.mxu0
        %v1141 = vadd.f32 %v338, %v1140
        %v1142 = vpop.f32.mrf.mxu0
        %v1143 = vadd.f32 %v338, %v1142
        %1144 = vmatmul.bf16.gmra.mxu0 %v832
        %v1145 = vpop.f32.mrf.mxu0
        %v1146 = vadd.f32 %v338, %v1145
        %v1147 = vpop.f32.mrf.mxu0
        %v1148 = vadd.f32 %v338, %v1147
        %1149 = vmatmul.bf16.gmra.mxu0 %v835
        %v1150 = vpop.f32.mrf.mxu0
        %v1151 = vadd.f32 %v338, %v1150
        %v1152 = vpop.f32.mrf.mxu0
        %v1153 = vadd.f32 %v338, %v1152
        %1154 = vmatmul.bf16.gmra.mxu0 %v838
        %v1155 = vpop.f32.mrf.mxu0
        %v1156 = vadd.f32 %v338, %v1155
        %v1157 = vpop.f32.mrf.mxu0
        %v1158 = vadd.f32 %v338, %v1157
        %1159 = vmatmul.bf16.gmra.mxu0 %v841
        %v1160 = vpop.f32.mrf.mxu0
        %v1161 = vadd.f32 %v338, %v1160
        %v1162 = vpop.f32.mrf.mxu0
        %v1163 = vadd.f32 %v338, %v1162
        %1164 = vmatmul.bf16.gmra.mxu0 %v844
        %v1165 = vpop.f32.mrf.mxu0
        %v1166 = vadd.f32 %v338, %v1165
        %v1167 = vpop.f32.mrf.mxu0
        %v1168 = vadd.f32 %v338, %v1167
        %1169 = vmatmul.bf16.gmra.mxu0 %v847
        %v1170 = vpop.f32.mrf.mxu0
        %v1171 = vadd.f32 %v338, %v1170
        %v1172 = vpop.f32.mrf.mxu0
        %v1173 = vadd.f32 %v338, %v1172
        %1174 = vmatmul.bf16.gmra.mxu0 %v850
        %v1175 = vpop.f32.mrf.mxu0
        %v1176 = vadd.f32 %v338, %v1175
        %v1177 = vpop.f32.mrf.mxu0
        %v1178 = vadd.f32 %v338, %v1177
        %1179 = vmatmul.bf16.gmra.mxu0 %v853
        %v1180 = vpop.f32.mrf.mxu0
        %v1181 = vadd.f32 %v338, %v1180
        %v1182 = vpop.f32.mrf.mxu0
        %v1183 = vadd.f32 %v338, %v1182
        %1184 = vmatmul.bf16.gmra.mxu0 %v856
        %v1185 = vpop.f32.mrf.mxu0
        %v1186 = vadd.f32 %v338, %v1185
        %v1187 = vpop.f32.mrf.mxu0
        %v1188 = vadd.f32 %v338, %v1187
        %1189 = vmatmul.bf16.gmra.mxu0 %v859
        %v1190 = vpop.f32.mrf.mxu0
        %v1191 = vadd.f32 %v338, %v1190
        %v1192 = vpop.f32.mrf.mxu0
        %v1193 = vadd.f32 %v338, %v1192
        %1194 = vmatmul.bf16.gmra.mxu0 %v862
        %v1195 = vpop.f32.mrf.mxu0
        %v1196 = vadd.f32 %v338, %v1195
        %v1197 = vpop.f32.mrf.mxu0
        %v1198 = vadd.f32 %v338, %v1197
        %1199 = vdwg.mxu0
        %v1200 = vmax.f32 %v881, 0.0
        %v1201 = vmax.f32 %v883, 0.0
        %v1202 = vmax.f32 %v886, 0.0
        %v1203 = vmax.f32 %v888, 0.0
        %v1204 = vmax.f32 %v891, 0.0
        %v1205 = vmax.f32 %v893, 0.0
        %v1206 = vmax.f32 %v896, 0.0
        %v1207 = vmax.f32 %v898, 0.0
        %v1208 = vmax.f32 %v901, 0.0
        %v1209 = vmax.f32 %v903, 0.0
        %v1210 = vmax.f32 %v906, 0.0
        %v1211 = vmax.f32 %v908, 0.0
        %v1212 = vmax.f32 %v911, 0.0
        %v1213 = vmax.f32 %v913, 0.0
        %v1214 = vmax.f32 %v916, 0.0
        %v1215 = vmax.f32 %v918, 0.0
        %v1216 = vmax.f32 %v921, 0.0
        %v1217 = vmax.f32 %v923, 0.0
        %v1218 = vmax.f32 %v926, 0.0
        %v1219 = vmax.f32 %v928, 0.0
        %v1220 = vmax.f32 %v931, 0.0
        %v1221 = vmax.f32 %v933, 0.0
        %v1222 = vmax.f32 %v936, 0.0
        %v1223 = vmax.f32 %v938, 0.0
        %v1224 = vmax.f32 %v941, 0.0
        %v1225 = vmax.f32 %v943, 0.0
        %v1226 = vmax.f32 %v946, 0.0
        %v1227 = vmax.f32 %v948, 0.0
        %v1228 = vmax.f32 %v951, 0.0
        %v1229 = vmax.f32 %v953, 0.0
        %v1230 = vmax.f32 %v956, 0.0
        %v1231 = vmax.f32 %v958, 0.0
        %v1232 = vmax.f32 %v961, 0.0
        %v1233 = vmax.f32 %v963, 0.0
        %v1234 = vmax.f32 %v966, 0.0
        %v1235 = vmax.f32 %v968, 0.0
        %v1236 = vmax.f32 %v971, 0.0
        %v1237 = vmax.f32 %v973, 0.0
        %v1238 = vmax.f32 %v976, 0.0
        %v1239 = vmax.f32 %v978, 0.0
        %v1240 = vmax.f32 %v981, 0.0
        %v1241 = vmax.f32 %v983, 0.0
        %v1242 = vmax.f32 %v986, 0.0
        %v1243 = vmax.f32 %v988, 0.0
        %v1244 = vmax.f32 %v991, 0.0
        %v1245 = vmax.f32 %v993, 0.0
        %v1246 = vmax.f32 %v996, 0.0
        %v1247 = vmax.f32 %v998, 0.0
        %v1248 = vmax.f32 %v1001, 0.0
        %v1249 = vmax.f32 %v1003, 0.0
        %v1250 = vmax.f32 %v1006, 0.0
        %v1251 = vmax.f32 %v1008, 0.0
        %v1252 = vmax.f32 %v1011, 0.0
        %v1253 = vmax.f32 %v1013, 0.0
        %v1254 = vmax.f32 %v1016, 0.0
        %v1255 = vmax.f32 %v1018, 0.0
        %v1256 = vmax.f32 %v1021, 0.0
        %v1257 = vmax.f32 %v1023, 0.0
        %v1258 = vmax.f32 %v1026, 0.0
        %v1259 = vmax.f32 %v1028, 0.0
        %v1260 = vmax.f32 %v1031, 0.0
        %v1261 = vmax.f32 %v1033, 0.0
        %v1262 = vmax.f32 %v1036, 0.0
        %v1263 = vmax.f32 %v1038, 0.0
        %v1264 = vmax.f32 %v1041, 0.0
        %v1265 = vmax.f32 %v1043, 0.0
        %v1266 = vmax.f32 %v1046, 0.0
        %v1267 = vmax.f32 %v1048, 0.0
        %v1268 = vmax.f32 %v1051, 0.0
        %v1269 = vmax.f32 %v1053, 0.0
        %v1270 = vmax.f32 %v1056, 0.0
        %v1271 = vmax.f32 %v1058, 0.0
        %v1272 = vmax.f32 %v1061, 0.0
        %v1273 = vmax.f32 %v1063, 0.0
        %v1274 = vmax.f32 %v1066, 0.0
        %v1275 = vmax.f32 %v1068, 0.0
        %v1276 = vmax.f32 %v1071, 0.0
        %v1277 = vmax.f32 %v1073, 0.0
        %v1278 = vmax.f32 %v1076, 0.0
        %v1279 = vmax.f32 %v1078, 0.0
        %v1280 = vmax.f32 %v1081, 0.0
        %v1281 = vmax.f32 %v1083, 0.0
        %v1282 = vmax.f32 %v1086, 0.0
        %v1283 = vmax.f32 %v1088, 0.0
        %v1284 = vmax.f32 %v1091, 0.0
        %v1285 = vmax.f32 %v1093, 0.0
        %v1286 = vmax.f32 %v1096, 0.0
        %v1287 = vmax.f32 %v1098, 0.0
        %v1288 = vmax.f32 %v1101, 0.0
        %v1289 = vmax.f32 %v1103, 0.0
        %v1290 = vmax.f32 %v1106, 0.0
        %v1291 = vmax.f32 %v1108, 0.0
        %v1292 = vmax.f32 %v1111, 0.0
        %v1293 = vmax.f32 %v1113, 0.0
        %v1294 = vmax.f32 %v1116, 0.0
        %v1295 = vmax.f32 %v1118, 0.0
        %v1296 = vmax.f32 %v1121, 0.0
        %v1297 = vmax.f32 %v1123, 0.0
        %v1298 = vmax.f32 %v1126, 0.0
        %v1299 = vmax.f32 %v1128, 0.0
        %v1300 = vmax.f32 %v1131, 0.0
        %v1301 = vmax.f32 %v1133, 0.0
        %v1302 = vmax.f32 %v1136, 0.0
        %v1303 = vmax.f32 %v1138, 0.0
        %v1304 = vmax.f32 %v1141, 0.0
        %v1305 = vmax.f32 %v1143, 0.0
        %v1306 = vmax.f32 %v1146, 0.0
        %v1307 = vmax.f32 %v1148, 0.0
        %v1308 = vmax.f32 %v1151, 0.0
        %v1309 = vmax.f32 %v1153, 0.0
        %v1310 = vmax.f32 %v1156, 0.0
        %v1311 = vmax.f32 %v1158, 0.0
        %v1312 = vmax.f32 %v1161, 0.0
        %v1313 = vmax.f32 %v1163, 0.0
        %v1314 = vmax.f32 %v1166, 0.0
        %v1315 = vmax.f32 %v1168, 0.0
        %v1316 = vmax.f32 %v1171, 0.0
        %v1317 = vmax.f32 %v1173, 0.0
        %v1318 = vmax.f32 %v1176, 0.0
        %v1319 = vmax.f32 %v1178, 0.0
        %v1320 = vmax.f32 %v1181, 0.0
        %v1321 = vmax.f32 %v1183, 0.0
        %v1322 = vmax.f32 %v1186, 0.0
        %v1323 = vmax.f32 %v1188, 0.0
        %v1324 = vmax.f32 %v1191, 0.0
        %v1325 = vmax.f32 %v1193, 0.0
        %v1326 = vmax.f32 %v1196, 0.0
        %v1327 = vmax.f32 %v1198, 0.0
        %v1328 = vpack.c.bf16 %v1200, %v1200
        %v1329 = vpack.c.bf16 %v1201, %v1201
        %v1330 = vpack.c.bf16 %v1202, %v1202
        %v1331 = vpack.c.bf16 %v1203, %v1203
        %v1332 = vpack.c.bf16 %v1204, %v1204
        %v1333 = vpack.c.bf16 %v1205, %v1205
        %v1334 = vpack.c.bf16 %v1206, %v1206
        %v1335 = vpack.c.bf16 %v1207, %v1207
        %v1336 = vpack.c.bf16 %v1208, %v1208
        %v1337 = vpack.c.bf16 %v1209, %v1209
        %v1338 = vpack.c.bf16 %v1210, %v1210
        %v1339 = vpack.c.bf16 %v1211, %v1211
        %v1340 = vpack.c.bf16 %v1212, %v1212
        %v1341 = vpack.c.bf16 %v1213, %v1213
        %v1342 = vpack.c.bf16 %v1214, %v1214
        %v1343 = vpack.c.bf16 %v1215, %v1215
        %v1344 = vpack.c.bf16 %v1216, %v1216
        %v1345 = vpack.c.bf16 %v1217, %v1217
        %v1346 = vpack.c.bf16 %v1218, %v1218
        %v1347 = vpack.c.bf16 %v1219, %v1219
        %v1348 = vpack.c.bf16 %v1220, %v1220
        %v1349 = vpack.c.bf16 %v1221, %v1221
        %v1350 = vpack.c.bf16 %v1222, %v1222
        %v1351 = vpack.c.bf16 %v1223, %v1223
        %v1352 = vpack.c.bf16 %v1224, %v1224
        %v1353 = vpack.c.bf16 %v1225, %v1225
        %v1354 = vpack.c.bf16 %v1226, %v1226
        %v1355 = vpack.c.bf16 %v1227, %v1227
        %v1356 = vpack.c.bf16 %v1228, %v1228
        %v1357 = vpack.c.bf16 %v1229, %v1229
        %v1358 = vpack.c.bf16 %v1230, %v1230
        %v1359 = vpack.c.bf16 %v1231, %v1231
        %v1360 = vpack.c.bf16 %v1232, %v1232
        %v1361 = vpack.c.bf16 %v1233, %v1233
        %v1362 = vpack.c.bf16 %v1234, %v1234
        %v1363 = vpack.c.bf16 %v1235, %v1235
        %v1364 = vpack.c.bf16 %v1236, %v1236
        %v1365 = vpack.c.bf16 %v1237, %v1237
        %v1366 = vpack.c.bf16 %v1238, %v1238
        %v1367 = vpack.c.bf16 %v1239, %v1239
        %v1368 = vpack.c.bf16 %v1240, %v1240
        %v1369 = vpack.c.bf16 %v1241, %v1241
        %v1370 = vpack.c.bf16 %v1242, %v1242
        %v1371 = vpack.c.bf16 %v1243, %v1243
        %v1372 = vpack.c.bf16 %v1244, %v1244
        %v1373 = vpack.c.bf16 %v1245, %v1245
        %v1374 = vpack.c.bf16 %v1246, %v1246
        %v1375 = vpack.c.bf16 %v1247, %v1247
        %v1376 = vpack.c.bf16 %v1248, %v1248
        %v1377 = vpack.c.bf16 %v1249, %v1249
        %v1378 = vpack.c.bf16 %v1250, %v1250
        %v1379 = vpack.c.bf16 %v1251, %v1251
        %v1380 = vpack.c.bf16 %v1252, %v1252
        %v1381 = vpack.c.bf16 %v1253, %v1253
        %v1382 = vpack.c.bf16 %v1254, %v1254
        %v1383 = vpack.c.bf16 %v1255, %v1255
        %v1384 = vpack.c.bf16 %v1256, %v1256
        %v1385 = vpack.c.bf16 %v1257, %v1257
        %v1386 = vpack.c.bf16 %v1258, %v1258
        %v1387 = vpack.c.bf16 %v1259, %v1259
        %v1388 = vpack.c.bf16 %v1260, %v1260
        %v1389 = vpack.c.bf16 %v1261, %v1261
        %v1390 = vpack.c.bf16 %v1262, %v1262
        %v1391 = vpack.c.bf16 %v1263, %v1263
        %v1392 = vpack.c.bf16 %v1264, %v1264
        %v1393 = vpack.c.bf16 %v1265, %v1265
        %v1394 = vpack.c.bf16 %v1266, %v1266
        %v1395 = vpack.c.bf16 %v1267, %v1267
        %v1396 = vpack.c.bf16 %v1268, %v1268
        %v1397 = vpack.c.bf16 %v1269, %v1269
        %v1398 = vpack.c.bf16 %v1270, %v1270
        %v1399 = vpack.c.bf16 %v1271, %v1271
        %v1400 = vpack.c.bf16 %v1272, %v1272
        %v1401 = vpack.c.bf16 %v1273, %v1273
        %v1402 = vpack.c.bf16 %v1274, %v1274
        %v1403 = vpack.c.bf16 %v1275, %v1275
        %v1404 = vpack.c.bf16 %v1276, %v1276
        %v1405 = vpack.c.bf16 %v1277, %v1277
        %v1406 = vpack.c.bf16 %v1278, %v1278
        %v1407 = vpack.c.bf16 %v1279, %v1279
        %v1408 = vpack.c.bf16 %v1280, %v1280
        %v1409 = vpack.c.bf16 %v1281, %v1281
        %v1410 = vpack.c.bf16 %v1282, %v1282
        %v1411 = vpack.c.bf16 %v1283, %v1283
        %v1412 = vpack.c.bf16 %v1284, %v1284
        %v1413 = vpack.c.bf16 %v1285, %v1285
        %v1414 = vpack.c.bf16 %v1286, %v1286
        %v1415 = vpack.c.bf16 %v1287, %v1287
        %v1416 = vpack.c.bf16 %v1288, %v1288
        %v1417 = vpack.c.bf16 %v1289, %v1289
        %v1418 = vpack.c.bf16 %v1290, %v1290
        %v1419 = vpack.c.bf16 %v1291, %v1291
        %v1420 = vpack.c.bf16 %v1292, %v1292
        %v1421 = vpack.c.bf16 %v1293, %v1293
        %v1422 = vpack.c.bf16 %v1294, %v1294
        %v1423 = vpack.c.bf16 %v1295, %v1295
        %v1424 = vpack.c.bf16 %v1296, %v1296
        %v1425 = vpack.c.bf16 %v1297, %v1297
        %v1426 = vpack.c.bf16 %v1298, %v1298
        %v1427 = vpack.c.bf16 %v1299, %v1299
        %v1428 = vpack.c.bf16 %v1300, %v1300
        %v1429 = vpack.c.bf16 %v1301, %v1301
        %v1430 = vpack.c.bf16 %v1302, %v1302
        %v1431 = vpack.c.bf16 %v1303, %v1303
        %v1432 = vpack.c.bf16 %v1304, %v1304
        %v1433 = vpack.c.bf16 %v1305, %v1305
        %v1434 = vpack.c.bf16 %v1306, %v1306
        %v1435 = vpack.c.bf16 %v1307, %v1307
        %v1436 = vpack.c.bf16 %v1308, %v1308
        %v1437 = vpack.c.bf16 %v1309, %v1309
        %v1438 = vpack.c.bf16 %v1310, %v1310
        %v1439 = vpack.c.bf16 %v1311, %v1311
        %v1440 = vpack.c.bf16 %v1312, %v1312
        %v1441 = vpack.c.bf16 %v1313, %v1313
        %v1442 = vpack.c.bf16 %v1314, %v1314
        %v1443 = vpack.c.bf16 %v1315, %v1315
        %v1444 = vpack.c.bf16 %v1316, %v1316
        %v1445 = vpack.c.bf16 %v1317, %v1317
        %v1446 = vpack.c.bf16 %v1318, %v1318
        %v1447 = vpack.c.bf16 %v1319, %v1319
        %v1448 = vpack.c.bf16 %v1320, %v1320
        %v1449 = vpack.c.bf16 %v1321, %v1321
        %v1450 = vpack.c.bf16 %v1322, %v1322
        %v1451 = vpack.c.bf16 %v1323, %v1323
        %v1452 = vpack.c.bf16 %v1324, %v1324
        %v1453 = vpack.c.bf16 %v1325, %v1325
        %v1454 = vpack.c.bf16 %v1326, %v1326
        %v1455 = vpack.c.bf16 %v1327, %v1327
        %vm1456 = vcmask 519168
        %1457 = vst.msk [vmem:[%s190] sm:$0xf] %vm1456, %v1328
        %1458 = vst.msk [vmem:[%s190 + $0x4] sm:$0xf] %vm1456, %v1329
        %1459 = vst.msk [vmem:[%s190 + $0x8] sm:$0xf] %vm1456, %v1330
        %1460 = vst.msk [vmem:[%s190 + $0xc] sm:$0xf] %vm1456, %v1331
        %1461 = vst.msk [vmem:[%s190 + $0x10] sm:$0xf] %vm1456, %v1332
        %1462 = vst.msk [vmem:[%s190 + $0x14] sm:$0xf] %vm1456, %v1333
        %1463 = vst.msk [vmem:[%s190 + $0x18] sm:$0xf] %vm1456, %v1334
        %1464 = vst.msk [vmem:[%s190 + $0x1c] sm:$0xf] %vm1456, %v1335
        %1465 = vst.msk [vmem:[%s190 + $0x20] sm:$0xf] %vm1456, %v1336
        %1466 = vst.msk [vmem:[%s190 + $0x24] sm:$0xf] %vm1456, %v1337
        %1467 = vst.msk [vmem:[%s190 + $0x28] sm:$0xf] %vm1456, %v1338
        %1468 = vst.msk [vmem:[%s190 + $0x2c] sm:$0xf] %vm1456, %v1339
        %1469 = vst.msk [vmem:[%s190 + $0x30] sm:$0xf] %vm1456, %v1340
        %1470 = vst.msk [vmem:[%s190 + $0x34] sm:$0xf] %vm1456, %v1341
        %1471 = vst.msk [vmem:[%s190 + $0x38] sm:$0xf] %vm1456, %v1342
        %1472 = vst.msk [vmem:[%s190 + $0x3c] sm:$0xf] %vm1456, %v1343
        %1473 = vst.msk [vmem:[%s190 + $0x40] sm:$0xf] %vm1456, %v1344
        %1474 = vst.msk [vmem:[%s190 + $0x44] sm:$0xf] %vm1456, %v1345
        %1475 = vst.msk [vmem:[%s190 + $0x48] sm:$0xf] %vm1456, %v1346
        %1476 = vst.msk [vmem:[%s190 + $0x4c] sm:$0xf] %vm1456, %v1347
        %1477 = vst.msk [vmem:[%s190 + $0x50] sm:$0xf] %vm1456, %v1348
        %1478 = vst.msk [vmem:[%s190 + $0x54] sm:$0xf] %vm1456, %v1349
        %1479 = vst.msk [vmem:[%s190 + $0x58] sm:$0xf] %vm1456, %v1350
        %1480 = vst.msk [vmem:[%s190 + $0x5c] sm:$0xf] %vm1456, %v1351
        %1481 = vst.msk [vmem:[%s190 + $0x60] sm:$0xf] %vm1456, %v1352
        %1482 = vst.msk [vmem:[%s190 + $0x64] sm:$0xf] %vm1456, %v1353
        %1483 = vst.msk [vmem:[%s190 + $0x68] sm:$0xf] %vm1456, %v1354
        %1484 = vst.msk [vmem:[%s190 + $0x6c] sm:$0xf] %vm1456, %v1355
        %1485 = vst.msk [vmem:[%s190 + $0x70] sm:$0xf] %vm1456, %v1356
        %1486 = vst.msk [vmem:[%s190 + $0x74] sm:$0xf] %vm1456, %v1357
        %1487 = vst.msk [vmem:[%s190 + $0x78] sm:$0xf] %vm1456, %v1358
        %1488 = vst.msk [vmem:[%s190 + $0x7c] sm:$0xf] %vm1456, %v1359
        %1489 = vst.msk [vmem:[%s190 + $0x80] sm:$0xf] %vm1456, %v1360
        %1490 = vst.msk [vmem:[%s190 + $0x84] sm:$0xf] %vm1456, %v1361
        %1491 = vst.msk [vmem:[%s190 + $0x88] sm:$0xf] %vm1456, %v1362
        %1492 = vst.msk [vmem:[%s190 + $0x8c] sm:$0xf] %vm1456, %v1363
        %1493 = vst.msk [vmem:[%s190 + $0x90] sm:$0xf] %vm1456, %v1364
        %1494 = vst.msk [vmem:[%s190 + $0x94] sm:$0xf] %vm1456, %v1365
        %1495 = vst.msk [vmem:[%s190 + $0x98] sm:$0xf] %vm1456, %v1366
        %1496 = vst.msk [vmem:[%s190 + $0x9c] sm:$0xf] %vm1456, %v1367
        %1497 = vst.msk [vmem:[%s190 + $0xa0] sm:$0xf] %vm1456, %v1368
        %1498 = vst.msk [vmem:[%s190 + $0xa4] sm:$0xf] %vm1456, %v1369
        %1499 = vst.msk [vmem:[%s190 + $0xa8] sm:$0xf] %vm1456, %v1370
        %1500 = vst.msk [vmem:[%s190 + $0xac] sm:$0xf] %vm1456, %v1371
        %1501 = vst.msk [vmem:[%s190 + $0xb0] sm:$0xf] %vm1456, %v1372
        %1502 = vst.msk [vmem:[%s190 + $0xb4] sm:$0xf] %vm1456, %v1373
        %1503 = vst.msk [vmem:[%s190 + $0xb8] sm:$0xf] %vm1456, %v1374
        %1504 = vst.msk [vmem:[%s190 + $0xbc] sm:$0xf] %vm1456, %v1375
        %1505 = vst.msk [vmem:[%s190 + $0xc0] sm:$0xf] %vm1456, %v1376
        %1506 = vst.msk [vmem:[%s190 + $0xc4] sm:$0xf] %vm1456, %v1377
        %1507 = vst.msk [vmem:[%s190 + $0xc8] sm:$0xf] %vm1456, %v1378
        %1508 = vst.msk [vmem:[%s190 + $0xcc] sm:$0xf] %vm1456, %v1379
        %1509 = vst.msk [vmem:[%s190 + $0xd0] sm:$0xf] %vm1456, %v1380
        %1510 = vst.msk [vmem:[%s190 + $0xd4] sm:$0xf] %vm1456, %v1381
        %1511 = vst.msk [vmem:[%s190 + $0xd8] sm:$0xf] %vm1456, %v1382
        %1512 = vst.msk [vmem:[%s190 + $0xdc] sm:$0xf] %vm1456, %v1383
        %1513 = vst.msk [vmem:[%s190 + $0xe0] sm:$0xf] %vm1456, %v1384
        %1514 = vst.msk [vmem:[%s190 + $0xe4] sm:$0xf] %vm1456, %v1385
        %1515 = vst.msk [vmem:[%s190 + $0xe8] sm:$0xf] %vm1456, %v1386
        %1516 = vst.msk [vmem:[%s190 + $0xec] sm:$0xf] %vm1456, %v1387
        %1517 = vst.msk [vmem:[%s190 + $0xf0] sm:$0xf] %vm1456, %v1388
        %1518 = vst.msk [vmem:[%s190 + $0xf4] sm:$0xf] %vm1456, %v1389
        %1519 = vst.msk [vmem:[%s190 + $0xf8] sm:$0xf] %vm1456, %v1390
        %1520 = vst.msk [vmem:[%s190 + $0xfc] sm:$0xf] %vm1456, %v1391
        %1521 = vst.msk [vmem:[%s190 + $0x100] sm:$0xf] %vm1456, %v1392
        %1522 = vst.msk [vmem:[%s190 + $0x104] sm:$0xf] %vm1456, %v1393
        %1523 = vst.msk [vmem:[%s190 + $0x108] sm:$0xf] %vm1456, %v1394
        %1524 = vst.msk [vmem:[%s190 + $0x10c] sm:$0xf] %vm1456, %v1395
        %1525 = vst.msk [vmem:[%s190 + $0x110] sm:$0xf] %vm1456, %v1396
        %1526 = vst.msk [vmem:[%s190 + $0x114] sm:$0xf] %vm1456, %v1397
        %1527 = vst.msk [vmem:[%s190 + $0x118] sm:$0xf] %vm1456, %v1398
        %1528 = vst.msk [vmem:[%s190 + $0x11c] sm:$0xf] %vm1456, %v1399
        %1529 = vst.msk [vmem:[%s190 + $0x120] sm:$0xf] %vm1456, %v1400
        %1530 = vst.msk [vmem:[%s190 + $0x124] sm:$0xf] %vm1456, %v1401
        %1531 = vst.msk [vmem:[%s190 + $0x128] sm:$0xf] %vm1456, %v1402
        %1532 = vst.msk [vmem:[%s190 + $0x12c] sm:$0xf] %vm1456, %v1403
        %1533 = vst.msk [vmem:[%s190 + $0x130] sm:$0xf] %vm1456, %v1404
        %1534 = vst.msk [vmem:[%s190 + $0x134] sm:$0xf] %vm1456, %v1405
        %1535 = vst.msk [vmem:[%s190 + $0x138] sm:$0xf] %vm1456, %v1406
        %1536 = vst.msk [vmem:[%s190 + $0x13c] sm:$0xf] %vm1456, %v1407
        %1537 = vst.msk [vmem:[%s190 + $0x140] sm:$0xf] %vm1456, %v1408
        %1538 = vst.msk [vmem:[%s190 + $0x144] sm:$0xf] %vm1456, %v1409
        %1539 = vst.msk [vmem:[%s190 + $0x148] sm:$0xf] %vm1456, %v1410
        %1540 = vst.msk [vmem:[%s190 + $0x14c] sm:$0xf] %vm1456, %v1411
        %1541 = vst.msk [vmem:[%s190 + $0x150] sm:$0xf] %vm1456, %v1412
        %1542 = vst.msk [vmem:[%s190 + $0x154] sm:$0xf] %vm1456, %v1413
        %1543 = vst.msk [vmem:[%s190 + $0x158] sm:$0xf] %vm1456, %v1414
        %1544 = vst.msk [vmem:[%s190 + $0x15c] sm:$0xf] %vm1456, %v1415
        %1545 = vst.msk [vmem:[%s190 + $0x160] sm:$0xf] %vm1456, %v1416
        %1546 = vst.msk [vmem:[%s190 + $0x164] sm:$0xf] %vm1456, %v1417
        %1547 = vst.msk [vmem:[%s190 + $0x168] sm:$0xf] %vm1456, %v1418
        %1548 = vst.msk [vmem:[%s190 + $0x16c] sm:$0xf] %vm1456, %v1419
        %1549 = vst.msk [vmem:[%s190 + $0x170] sm:$0xf] %vm1456, %v1420
        %1550 = vst.msk [vmem:[%s190 + $0x174] sm:$0xf] %vm1456, %v1421
        %1551 = vst.msk [vmem:[%s190 + $0x178] sm:$0xf] %vm1456, %v1422
        %1552 = vst.msk [vmem:[%s190 + $0x17c] sm:$0xf] %vm1456, %v1423
        %1553 = vst.msk [vmem:[%s190 + $0x180] sm:$0xf] %vm1456, %v1424
        %1554 = vst.msk [vmem:[%s190 + $0x184] sm:$0xf] %vm1456, %v1425
        %1555 = vst.msk [vmem:[%s190 + $0x188] sm:$0xf] %vm1456, %v1426
        %1556 = vst.msk [vmem:[%s190 + $0x18c] sm:$0xf] %vm1456, %v1427
        %1557 = vst.msk [vmem:[%s190 + $0x190] sm:$0xf] %vm1456, %v1428
        %1558 = vst.msk [vmem:[%s190 + $0x194] sm:$0xf] %vm1456, %v1429
        %1559 = vst.msk [vmem:[%s190 + $0x198] sm:$0xf] %vm1456, %v1430
        %1560 = vst.msk [vmem:[%s190 + $0x19c] sm:$0xf] %vm1456, %v1431
        %1561 = vst.msk [vmem:[%s190 + $0x1a0] sm:$0xf] %vm1456, %v1432
        %1562 = vst.msk [vmem:[%s190 + $0x1a4] sm:$0xf] %vm1456, %v1433
        %1563 = vst.msk [vmem:[%s190 + $0x1a8] sm:$0xf] %vm1456, %v1434
        %1564 = vst.msk [vmem:[%s190 + $0x1ac] sm:$0xf] %vm1456, %v1435
        %1565 = vst.msk [vmem:[%s190 + $0x1b0] sm:$0xf] %vm1456, %v1436
        %1566 = vst.msk [vmem:[%s190 + $0x1b4] sm:$0xf] %vm1456, %v1437
        %1567 = vst.msk [vmem:[%s190 + $0x1b8] sm:$0xf] %vm1456, %v1438
        %1568 = vst.msk [vmem:[%s190 + $0x1bc] sm:$0xf] %vm1456, %v1439
        %1569 = vst.msk [vmem:[%s190 + $0x1c0] sm:$0xf] %vm1456, %v1440
        %1570 = vst.msk [vmem:[%s190 + $0x1c4] sm:$0xf] %vm1456, %v1441
        %1571 = vst.msk [vmem:[%s190 + $0x1c8] sm:$0xf] %vm1456, %v1442
        %1572 = vst.msk [vmem:[%s190 + $0x1cc] sm:$0xf] %vm1456, %v1443
        %1573 = vst.msk [vmem:[%s190 + $0x1d0] sm:$0xf] %vm1456, %v1444
        %1574 = vst.msk [vmem:[%s190 + $0x1d4] sm:$0xf] %vm1456, %v1445
        %1575 = vst.msk [vmem:[%s190 + $0x1d8] sm:$0xf] %vm1456, %v1446
        %1576 = vst.msk [vmem:[%s190 + $0x1dc] sm:$0xf] %vm1456, %v1447
        %1577 = vst.msk [vmem:[%s190 + $0x1e0] sm:$0xf] %vm1456, %v1448
        %1578 = vst.msk [vmem:[%s190 + $0x1e4] sm:$0xf] %vm1456, %v1449
        %1579 = vst.msk [vmem:[%s190 + $0x1e8] sm:$0xf] %vm1456, %v1450
        %1580 = vst.msk [vmem:[%s190 + $0x1ec] sm:$0xf] %vm1456, %v1451
        %1581 = vst.msk [vmem:[%s190 + $0x1f0] sm:$0xf] %vm1456, %v1452
        %1582 = vst.msk [vmem:[%s190 + $0x1f4] sm:$0xf] %vm1456, %v1453
        %1583 = vst.msk [vmem:[%s190 + $0x1f8] sm:$0xf] %vm1456, %v1454
        %1584 = vst.msk [vmem:[%s190 + $0x1fc] sm:$0xf] %vm1456, %v1455
        %s1585 = sand.u32 %s109, 1
        %s1586 = scalar_lea.sflag [#allocation3], %s1585
        %s1587 = sand.u32 %s109, 1
        %s1588 = smul.addr %s1587, 512
        %s1589 = scalar_lea.vmem [#allocation2], %s1588
        // Predicated region
        $region33: #{tpu_custom_call.1} parent=31 // pred_check
          %p1590 = pneg %p119
        $region34: #{tpu_custom_call.1} parent=31 // pred_check_branch
          %1592 = sbr.rel (%p1590) target = $region36
        $region35: #{tpu_custom_call.1} parent=31 // pred_region
          %s1593 = smul.u32 32, %s22
          %1595 = vsyncadd %s1586, 0
          %s1596 = smul.addr %s1593, 4
          %s1597 = smul.addr %s21, 128
          %s1598 = sadd.s32 %s1596, %s1597
          %s1599 = smul.addr %s1598, 4
          %s1600 = scalar_lea.hbm %s3, %s1599
          %s1601 = sshll.u32 %s1589, 4
          %s1602 = int_to_ptr.vmem [resolvable:$true] %s1601
          %s1603 = sshll.u32 %s1600, 4
          %s1604 = int_to_ptr.hbm [resolvable:$true] %s1603
          %1609 = dma.vmem_to_hbm [thread:$0]  %s1602, 8192, %s1604, %s1586, 64, 64, 4
        $region36: #{tpu_custom_call.1} parent=31 // pred_fallthru
          _
      $region32: #{tpu_custom_call.1} parent=5 // pred_fallthru
        _
      %p1610 = scmp.le.s32.totalorder 2, %s12
      // Predicated region
      $region37: #{tpu_custom_call.1} parent=5 // pred_check
        %p1611 = pneg %p1610
      $region38: #{tpu_custom_call.1} parent=5 // pred_check_branch
        %1613 = sbr.rel (%p1611) target = $region40
      $region39: #{tpu_custom_call.1} parent=5 // pred_region
        %s1614 = ssub.s32 %s12, 2
        // Predicated region
        $region41: #{tpu_custom_call.1} parent=39 // pred_check
          %p1615 = pneg %p125
        $region42: #{tpu_custom_call.1} parent=39 // pred_check_branch
          %1617 = sbr.rel (%p1615) target = $region44
        $region43: #{tpu_custom_call.1} parent=39 // pred_region
          %s1618 = sand.u32 %s110, 1
          %s1619 = scalar_lea.sflag [#allocation3], %s1618
          %s1620 = sand.u32 %s110, 1
          %s1621 = smul.addr %s1620, 512
          %s1622 = scalar_lea.vmem [#allocation2], %s1621
          %1624 = dma.done %s1619, 8192
        $region44: #{tpu_custom_call.1} parent=39 // pred_fallthru
          _
      $region40: #{tpu_custom_call.1} parent=5 // pred_fallthru
        _
    $region6: #{tpu_custom_call.1} parent=1 // loop_footer
      %s16 = sadd.s32 1, %s12
    $region7: #{tpu_custom_call.1} parent=1 // loop_footer_branch
      %11 = sbr.rel target = $region3
    $region8: #{tpu_custom_call.1} parent=1 // loop_exit
      _
    %1625 = vsyncpa [#allocation3], 1
    %s1626 = scalar_lea.sflag [#allocation3], 1
    %1627 = vsyncpa %s1626, 1

</llo_original>
